<compile_context>
chip_gen: v6e
topology: v6e:2x2x1
jax: 0.10.0
libtpu: 0.0.40
codegen_flags: <defaults>
</compile_context>

<pallas_src>
import functools

import jax
import jax.numpy as jnp
from jax.experimental import pallas as pl
from jax.experimental.pallas import tpu as pltpu

_LANE = 128
_MAX_TN = 4096
# Levels with fewer pixels than this go to the plain-XLA einsum path.  In
# production ~1024 (8*128) is a good threshold; 256 here so the small demo
# shapes still exercise the Pallas path on the top levels.
_MIN_PALLAS_HW = 256


def _round_up(x, m):
    return ((x + m - 1) // m) * m


# ----------------------------------------------------------------------------
# Pallas kernel: fused SSN head (single matmul for all three heads + epilogue)
# ----------------------------------------------------------------------------
def _ssn_head_kernel(feat_ref, mask_ref, w_ref, b_ref,
                     mean_ref, diag_ref, fact_ref, *, c, cp, cr, eps):
    f = feat_ref[0]                      # (Cin, TN)  bf16, pixels on lane axis
    m = mask_ref[0]                      # (1,  TN)   f32 ROI mask row (lane dense)

    # One fused bf16 MXU matmul covers mean / log-cov-diag / cov-factor heads;
    # f32 accumulation.  Bias add + epilogue in f32.
    y = jnp.dot(w_ref[...], f, preferred_element_type=jnp.float32) + b_ref[...]

    # Row layout of y (8-row-aligned segments):
    #   [mean (c) | pad][log-cov-diag (c) | pad][cov-factor (cr) | pad]
    mean_ref[0] = y[:c].astype(mean_ref.dtype)
    # cov_diag = (exp(log_diag) + eps) * mask + eps   (matches the torch SSN
    # reference: exp(.)+eps first, then ROI masking, then +eps again).
    diag_ref[0] = ((jnp.exp(y[cp:cp + c]) + eps) * m + eps).astype(diag_ref.dtype)
    fact_ref[0] = (y[2 * cp:2 * cp + cr] * m).astype(fact_ref.dtype)


def _choose_tn(hw, max_tn=_MAX_TN):
    """Largest pixel-tile width <= max_tn that is a multiple of 128 and evenly
    divides hw (hw is guaranteed to be a multiple of 128 by the caller)."""
    tn = min(max_tn, hw)
    while hw % tn != 0:
        tn -= _LANE
    return tn


def ssn_head_pallas(feat_bf16, mask, wcat_bf16, bcat, *, out_channels, c_pad, rank, eps):
    """feat_bf16: (B, Cin, HWp) bf16, mask: (B, 1, HWp) f32,
    wcat_bf16: (Ctot_pad, Cin) bf16, bcat: (Ctot_pad, 1) f32.

    Returns (mean (B,C,HWp), cov_diag (B,C,HWp), cov_factor (B,C*rank,HWp)) in f32."""
    B, Cin, HWp = feat_bf16.shape
    C = out_channels
    CR = C * rank
    Ctot = wcat_bf16.shape[0]

    TN = _choose_tn(HWp)
    # Guarantee >= 2 grid steps so both v7x TensorCores get work.
    if B * (HWp // TN) < 2 and TN % (2 * _LANE) == 0:
        TN //= 2
    grid = (B, HWp // TN)

    cost = pl.CostEstimate(
        flops=2 * B * HWp * Ctot * Cin,
        transcendentals=B * HWp * C,
        bytes_accessed=int(feat_bf16.size * 2 + mask.size * 4
                           + wcat_bf16.size * 2 + bcat.size * 4
                           + B * HWp * (2 * C + CR) * 4),
    )

    return pl.pallas_call(
        functools.partial(_ssn_head_kernel, c=C, cp=c_pad, cr=CR, eps=eps),
        out_shape=(
            jax.ShapeDtypeStruct((B, C, HWp), jnp.float32),
            jax.ShapeDtypeStruct((B, C, HWp), jnp.float32),
            jax.ShapeDtypeStruct((B, CR, HWp), jnp.float32),
        ),
        grid_spec=pltpu.PrefetchScalarGridSpec(
            num_scalar_prefetch=0,
            grid=grid,
            in_specs=[
                pl.BlockSpec((1, Cin, TN), lambda b, i: (b, 0, i)),   # features (bf16)
                pl.BlockSpec((1, 1, TN), lambda b, i: (b, 0, i)),     # ROI mask row
                pl.BlockSpec((Ctot, Cin), lambda b, i: (0, 0)),       # fused weights
                pl.BlockSpec((Ctot, 1), lambda b, i: (0, 0)),         # fused biases
            ],
            out_specs=[
                pl.BlockSpec((1, C, TN), lambda b, i: (b, 0, i)),     # logit mean
                pl.BlockSpec((1, C, TN), lambda b, i: (b, 0, i)),     # cov diag
                pl.BlockSpec((1, CR, TN), lambda b, i: (b, 0, i)),    # cov factor
            ],
        ),
        compiler_params=pltpu.CompilerParams(
            dimension_semantics=("parallel", "parallel")),
        cost_estimate=cost,
    )(feat_bf16, mask, wcat_bf16, bcat)


# ----------------------------------------------------------------------------
# Plain-JAX glue reproducing the torch SSN head outputs.
# ----------------------------------------------------------------------------
def ssn_head_forward(decoder_output_nchw, mask_nchw, params, *, out_channels, rank, eps,
                     cov_factor_rank_last=True):
    B, Cin, H, W = decoder_output_nchw.shape
    C = out_channels
    CR = C * rank
    HW = H * W

    feat = decoder_output_nchw.reshape(B, Cin, HW)   # free view of NCHW
    m = mask_nchw.reshape(B, 1, HW)                  # free view

    if HW >= _MIN_PALLAS_HW:
        # Pad a ragged pixel axis up to a lane multiple (masked off, sliced back).
        HWp = _round_up(HW, _LANE)
        if HWp != HW:
            feat = jnp.pad(feat, ((0, 0), (0, 0), (0, HWp - HW)))
            m = jnp.pad(m, ((0, 0), (0, 0), (0, HWp - HW)))

        # Fuse the three 1x1-conv heads; pad each segment to a multiple of 8 rows
        # so the in-kernel row slices stay sublane-aligned.  Row order within the
        # factor segment: rank-major channel k = r*C + c (torch view(B,rank,C,HW)).
        Cp = _round_up(C, 8)
        CRp = _round_up(CR, 8)

        def pad_rows(a, n):
            return jnp.pad(a, ((0, n - a.shape[0]),) + ((0, 0),) * (a.ndim - 1))

        wcat = jnp.concatenate([pad_rows(params["wm"], Cp),
                                pad_rows(params["wd"], Cp),
                                pad_rows(params["wf"], CRp)], axis=0)
        bcat = jnp.concatenate([pad_rows(params["bm"], Cp),
                                pad_rows(params["bd"], Cp),
                                pad_rows(params["bf"], CRp)])[:, None]

        # HBM-bound kernel: halve the feature/weight bytes with bf16; f32 accum.
        mean, diag, fact = ssn_head_pallas(
            feat.astype(jnp.bfloat16), m.astype(jnp.float32),
            wcat.astype(jnp.bfloat16), bcat.astype(jnp.float32),
            out_channels=C, c_pad=Cp, rank=rank, eps=eps)

        if HWp != HW:
            mean, diag, fact = mean[..., :HW], diag[..., :HW], fact[..., :HW]
    else:
        # Tiny deep-supervision level: sub-128 lane tiles + launch overhead make a
        # Pallas call a net loss; let XLA fuse three small einsums + epilogue.
        mean = jnp.einsum("oc,bcp->bop", params["wm"], feat) + params["bm"][None, :, None]
        logd = jnp.einsum("oc,bcp->bop", params["wd"], feat) + params["bd"][None, :, None]
        facr = jnp.einsum("oc,bcp->bop", params["wf"], feat) + params["bf"][None, :, None]
        diag = (jnp.exp(logd) + eps) * m + eps
        fact = facr * m

    logit_mean = mean.reshape(B, C, H, W)            # already NCHW
    cov_diag = diag.reshape(B, C * HW)               # torch NCHW flatten
    cov_factor = fact.reshape(B, rank, C * HW)
    if cov_factor_rank_last:
        # torch: view(B,rank,C,H*W).flatten(2,3).transpose(1,2) -> (B, C*H*W, rank)
        # TODO(synk): if the downstream LowRankMultivariateNormal consumer can take
        # (B, rank, C*H*W), pass cov_factor_rank_last=False and drop this transpose
        # (it re-reads/re-writes the largest tensor with a rank-wide minor dim).
        cov_factor = jnp.transpose(cov_factor, (0, 2, 1))

    # TODO(synk): torch's LowRankMultivariateNormal 'distribution' object has no
    # Pallas equivalent; the (mean, cov_diag, cov_factor) parametrization is returned.
    return {"logit_mean": logit_mean, "cov_diag": cov_diag, "cov_factor": cov_factor}


def nearest_resize_mask(mask_nchw, out_hw):
    """F.interpolate(mask, size=out_hw, mode='nearest') for NCHW."""
    B, C, H, W = mask_nchw.shape
    h, w = out_hw
    idx_h = jnp.floor(jnp.arange(h) * (H / h)).astype(jnp.int32)
    idx_w = jnp.floor(jnp.arange(w) * (W / w)).astype(jnp.int32)
    return mask_nchw[:, :, idx_h, :][:, :, :, idx_w]


def synth_base_unet(x_nchw, unet_params):
    """Deterministic stand-in for the external base UNet: one deep-supervision
    output per level at scale 1/2^l with `intermediate_channels` channels."""
    outs = []
    for l, (w, b) in enumerate(unet_params):
        s = 2 ** l
        xs = x_nchw[:, :, ::s, ::s]
        feat = jnp.einsum("bchw,cd->bdhw", xs, w) + b[None, :, None, None]
        outs.append(jnp.tanh(feat))
    return outs


def ssn_wrapped_deep_supervision_forward(x_nchw, unet_params, head_params_list,
                                         *, out_channels, rank, eps):
    outputs = synth_base_unet(x_nchw, unet_params)
    mask = x_nchw[:, -1][:, None]                    # x[:, -1].unsqueeze(1) -> (B,1,H,W)
    ssn_outputs = []
    for head_params, decoder_output in zip(head_params_list, outputs):
        mask_l = nearest_resize_mask(mask, decoder_output.shape[2:])
        ssn_outputs.append(
            ssn_head_forward(decoder_output, mask_l, head_params,
                             out_channels=out_channels, rank=rank, eps=eps))
    return ssn_outputs


# ----------------------------------------------------------------------------
# Pure-JAX reference (no Pallas) for correctness checking
# ----------------------------------------------------------------------------
def _ssn_head_reference(decoder_output_nchw, mask_nchw, params, *, out_channels, rank, eps,
                        quantize_matmul=False):
    B, Cin, H, W = decoder_output_nchw.shape
    C = out_channels
    HW = H * W
    f = decoder_output_nchw.reshape(B, Cin, HW)
    m = mask_nchw.reshape(B, 1, HW)
    if quantize_matmul:
        f = f.astype(jnp.bfloat16).astype(jnp.float32)
        q = lambda w: w.astype(jnp.bfloat16).astype(jnp.float32)
    else:
        q = lambda w: w
    mean = jnp.einsum("oc,bcp->bop", q(params["wm"]), f) + params["bm"][None, :, None]
    logd = jnp.einsum("oc,bcp->bop", q(params["wd"]), f) + params["bd"][None, :, None]
    fact = jnp.einsum("oc,bcp->bop", q(params["wf"]), f) + params["bf"][None, :, None]
    logit_mean = mean.reshape(B, C, H, W)
    cov_diag = ((jnp.exp(logd) + eps) * m + eps).reshape(B, C * HW)
    cov_factor = jnp.transpose((fact * m).reshape(B, rank, C * HW), (0, 2, 1))
    return {"logit_mean": logit_mean, "cov_diag": cov_diag, "cov_factor": cov_factor}


def reference_forward(x_nchw, unet_params, head_params_list, *, out_channels, rank, eps,
                      quantize_matmul_like_kernel=False):
    outputs = synth_base_unet(x_nchw, unet_params)
    mask = x_nchw[:, -1][:, None]
    refs = []
    for head_params, decoder_output in zip(head_params_list, outputs):
        hw = decoder_output.shape[2] * decoder_output.shape[3]
        quant = quantize_matmul_like_kernel and hw >= _MIN_PALLAS_HW
        mask_l = nearest_resize_mask(mask, decoder_output.shape[2:])
        refs.append(_ssn_head_reference(decoder_output, mask_l, head_params,
                                        out_channels=out_channels, rank=rank, eps=eps,
                                        quantize_matmul=quant))
    return refs


# ----------------------------------------------------------------------------
# Deterministic parameter construction + demo run
# ----------------------------------------------------------------------------
def make_params(key, in_ch, intermediate_channels, out_channels, rank, levels):
    keys = jax.random.split(key, 2 * levels)
    C, CR = out_channels, out_channels * rank
    unet_params = []
    for l in range(levels):
        kw, kb = jax.random.split(keys[l], 2)
        w = 0.1 * jax.random.normal(kw, (in_ch, intermediate_channels), jnp.float32)
        b = 0.1 * jax.random.normal(kb, (intermediate_channels,), jnp.float32)
        unet_params.append((w, b))

    head_params_list = []
    for l in range(levels):
        ks = jax.random.split(keys[levels + l], 6)
        head_params_list.append({
            "wm": 0.1 * jax.random.normal(ks[0], (C, intermediate_channels), jnp.float32),
            "bm": 0.1 * jax.random.normal(ks[1], (C,), jnp.float32),
            "wd": 0.1 * jax.random.normal(ks[2], (C, intermediate_channels), jnp.float32),
            "bd": 0.1 * jax.random.normal(ks[3], (C,), jnp.float32),
            "wf": 0.1 * jax.random.normal(ks[4], (CR, intermediate_channels), jnp.float32),
            "bf": 0.1 * jax.random.normal(ks[5], (CR,), jnp.float32),
        })
    return unet_params, head_params_list


if __name__ == "__main__":
    B, CIN_X, H, W = 2, 4, 32, 32          # last input channel is the ROI mask
    INTERMEDIATE = 32
    OUT_CHANNELS = 2
    RANK = 10
    LEVELS = 3                              # HW = 1024, 256 (Pallas), 64 (einsum fallback)
    EPS = 1e-5

    key = jax.random.PRNGKey(0)
    kx, kp = jax.random.split(key)
    x = jax.random.normal(kx, (B, CIN_X, H, W), jnp.float32)
    # make the mask channel binary like a ROI mask
    x = x.at[:, -1].set((x[:, -1] > 0.0).astype(jnp.float32))

    unet_params, head_params_list = make_params(kp, CIN_X, INTERMEDIATE,
                                                OUT_CHANNELS, RANK, LEVELS)

    fwd = jax.jit(functools.partial(
        ssn_wrapped_deep_supervision_forward,
        out_channels=OUT_CHANNELS, rank=RANK, eps=EPS))
    outs = fwd(x, unet_params, head_params_list)
    outs = jax.block_until_ready(outs)

    # Matched-precision reference (bf16 matmul inputs for the Pallas levels) and
    # full-f32 reference (torch semantics) for a fidelity check.
    refs_q = reference_forward(x, unet_params, head_params_list,
                               out_channels=OUT_CHANNELS, rank=RANK, eps=EPS,
                               quantize_matmul_like_kernel=True)
    refs_f = reference_forward(x, unet_params, head_params_list,
                               out_channels=OUT_CHANNELS, rank=RANK, eps=EPS,
                               quantize_matmul_like_kernel=False)

    for l, (o, rq, rf) in enumerate(zip(outs, refs_q, refs_f)):
        hl, wl = H // (2 ** l), W // (2 ** l)
        assert o["logit_mean"].shape == (B, OUT_CHANNELS, hl, wl)
        assert o["cov_diag"].shape == (B, OUT_CHANNELS * hl * wl)
        assert o["cov_factor"].shape == (B, OUT_CHANNELS * hl * wl, RANK)
        assert bool(jnp.all(jnp.isfinite(o["logit_mean"])))
        assert bool(jnp.all(o["cov_diag"] > 0.0))
        assert bool(jnp.all(jnp.isfinite(o["cov_factor"])))
        for k in ("logit_mean", "cov_diag", "cov_factor"):
            # tight check vs matched-precision (bf16-input) reference
            assert bool(jnp.allclose(o[k], rq[k], rtol=2e-3, atol=2e-3)), ("q", l, k)
            # loose fidelity check vs the full-f32 torch-equivalent reference
            assert bool(jnp.allclose(o[k], rf[k], rtol=5e-2, atol=5e-2)), ("f32", l, k)

    print("KERNEL_OK")
</pallas_src>

<mosaic_0001>
module attributes {stable_mosaic.version = 11 : i64} {
  func.func @_ssn_head_kernel(%arg0: i32, %arg1: i32, %arg2: memref<1x32x1024xbf16, #tpu.memory_space<vmem>>, %arg3: memref<1x1x1024xf32, #tpu.memory_space<vmem>>, %arg4: memref<40x32xbf16, #tpu.memory_space<vmem>>, %arg5: memref<40x1xf32, #tpu.memory_space<vmem>>, %arg6: memref<1x2x1024xf32, #tpu.memory_space<vmem>>, %arg7: memref<1x2x1024xf32, #tpu.memory_space<vmem>>, %arg8: memref<1x20x1024xf32, #tpu.memory_space<vmem>>) attributes {dimension_semantics = [#tpu.dimension_semantics<parallel>, #tpu.dimension_semantics<parallel>], iteration_bounds = array<i64: 2, 1>, scalar_prefetch = 0 : i64, scratch_operands = 0 : i64, tpu.core_type = #tpu.core_type<tc>, window_params = [{transform_indices = @transform_0, window_bounds = array<i64: 1, 32, 1024>}, {transform_indices = @transform_1, window_bounds = array<i64: 1, 1, 1024>}, {pipeline_mode = #tpu.pipeline_mode<synchronous>, transform_indices = @transform_2, window_bounds = array<i64: 40, 32>}, {pipeline_mode = #tpu.pipeline_mode<synchronous>, transform_indices = @transform_3, window_bounds = array<i64: 40, 1>}, {transform_indices = @transform_4, window_bounds = array<i64: 1, 2, 1024>}, {transform_indices = @transform_5, window_bounds = array<i64: 1, 2, 1024>}, {transform_indices = @transform_6, window_bounds = array<i64: 1, 20, 1024>}]} {
    %c0 = arith.constant 0 : index
    %c0_0 = arith.constant 0 : index
    %c0_1 = arith.constant 0 : index
    %0 = vector.load %arg2[%c0, %c0_0, %c0_1] : memref<1x32x1024xbf16, #tpu.memory_space<vmem>>, vector<1x32x1024xbf16>
    %1 = vector.shape_cast %0 : vector<1x32x1024xbf16> to vector<32x1024xbf16>
    %c0_2 = arith.constant 0 : index
    %c0_3 = arith.constant 0 : index
    %c0_4 = arith.constant 0 : index
    %2 = vector.load %arg3[%c0_2, %c0_3, %c0_4] : memref<1x1x1024xf32, #tpu.memory_space<vmem>>, vector<1x1x1024xf32>
    %3 = vector.shape_cast %2 : vector<1x1x1024xf32> to vector<1x1024xf32>
    %c0_5 = arith.constant 0 : index
    %c0_6 = arith.constant 0 : index
    %4 = vector.load %arg4[%c0_5, %c0_6] : memref<40x32xbf16, #tpu.memory_space<vmem>>, vector<40x32xbf16>
    %cst = arith.constant dense<0.000000e+00> : vector<40x1024xf32>
    %5 = tpu.matmul %4, %1, %cst {dimension_numbers = #tpu.dot_dimension_numbers<[1], [0], [0], [1], [0, 0, 1, 1], [], []>} : vector<40x32xbf16>, vector<32x1024xbf16>, vector<40x1024xf32> -> vector<40x1024xf32>
    %c0_7 = arith.constant 0 : index
    %c0_8 = arith.constant 0 : index
    %6 = vector.load %arg5[%c0_7, %c0_8] : memref<40x1xf32, #tpu.memory_space<vmem>>, vector<40x1xf32>
    %7 = vector.broadcast %6 : vector<40x1xf32> to vector<40x1024xf32>
    %8 = arith.addf %5, %7 : vector<40x1024xf32>
    %9 = vector.extract_strided_slice %8 {offsets = [0, 0], sizes = [2, 1024], strides = [1, 1]} : vector<40x1024xf32> to vector<2x1024xf32>
    %c0_9 = arith.constant 0 : index
    %c0_10 = arith.constant 0 : index
    %c0_11 = arith.constant 0 : index
    %10 = vector.load %arg6[%c0_9, %c0_10, %c0_11] : memref<1x2x1024xf32, #tpu.memory_space<vmem>>, vector<1x2x1024xf32>
    %11 = vector.shape_cast %10 : vector<1x2x1024xf32> to vector<2x1024xf32>
    %12 = vector.shape_cast %9 : vector<2x1024xf32> to vector<1x2x1024xf32>
    tpu.vector_store %arg6[%c0_9, %c0_10, %c0_11], %12 {strides = array<i32>} : memref<1x2x1024xf32, #tpu.memory_space<vmem>>, vector<1x2x1024xf32>,
    %13 = vector.extract_strided_slice %8 {offsets = [8, 0], sizes = [2, 1024], strides = [1, 1]} : vector<40x1024xf32> to vector<2x1024xf32>
    %14 = math.exp %13 : vector<2x1024xf32>
    %cst_12 = arith.constant 9.99999974E-6 : f32
    %15 = vector.broadcast %cst_12 : f32 to vector<2x1024xf32>
    %16 = arith.addf %14, %15 : vector<2x1024xf32>
    %17 = vector.broadcast %3 : vector<1x1024xf32> to vector<2x1024xf32>
    %18 = arith.mulf %16, %17 : vector<2x1024xf32>
    %cst_13 = arith.constant 9.99999974E-6 : f32
    %19 = vector.broadcast %cst_13 : f32 to vector<2x1024xf32>
    %20 = arith.addf %18, %19 : vector<2x1024xf32>
    %c0_14 = arith.constant 0 : index
    %c0_15 = arith.constant 0 : index
    %c0_16 = arith.constant 0 : index
    %21 = vector.load %arg7[%c0_14, %c0_15, %c0_16] : memref<1x2x1024xf32, #tpu.memory_space<vmem>>, vector<1x2x1024xf32>
    %22 = vector.shape_cast %21 : vector<1x2x1024xf32> to vector<2x1024xf32>
    %23 = vector.shape_cast %20 : vector<2x1024xf32> to vector<1x2x1024xf32>
    tpu.vector_store %arg7[%c0_14, %c0_15, %c0_16], %23 {strides = array<i32>} : memref<1x2x1024xf32, #tpu.memory_space<vmem>>, vector<1x2x1024xf32>,
    %24 = vector.extract_strided_slice %8 {offsets = [16, 0], sizes = [20, 1024], strides = [1, 1]} : vector<40x1024xf32> to vector<20x1024xf32>
    %25 = vector.broadcast %3 : vector<1x1024xf32> to vector<20x1024xf32>
    %26 = arith.mulf %24, %25 : vector<20x1024xf32>
    %c0_17 = arith.constant 0 : index
    %c0_18 = arith.constant 0 : index
    %c0_19 = arith.constant 0 : index
    %27 = vector.load %arg8[%c0_17, %c0_18, %c0_19] : memref<1x20x1024xf32, #tpu.memory_space<vmem>>, vector<1x20x1024xf32>
    %28 = vector.shape_cast %27 : vector<1x20x1024xf32> to vector<20x1024xf32>
    %29 = vector.shape_cast %26 : vector<20x1024xf32> to vector<1x20x1024xf32>
    tpu.vector_store %arg8[%c0_17, %c0_18, %c0_19], %29 {strides = array<i32>} : memref<1x20x1024xf32, #tpu.memory_space<vmem>>, vector<1x20x1024xf32>,
    return
  }
  func.func @transform_0(%arg0: i32, %arg1: i32) -> (i32, i32, i32) {
    %c0_i32 = arith.constant 0 : i32
    %c0_i32_0 = arith.constant 0 : i32
    return %arg0, %c0_i32, %arg1 : i32, i32, i32
  }
  func.func @transform_1(%arg0: i32, %arg1: i32) -> (i32, i32, i32) {
    %c0_i32 = arith.constant 0 : i32
    %c0_i32_0 = arith.constant 0 : i32
    return %arg0, %c0_i32, %arg1 : i32, i32, i32
  }
  func.func @transform_2(%arg0: i32, %arg1: i32) -> (i32, i32) {
    %c0_i32 = arith.constant 0 : i32
    %c0_i32_0 = arith.constant 0 : i32
    %c0_i32_1 = arith.constant 0 : i32
    return %c0_i32, %c0_i32_0 : i32, i32
  }
  func.func @transform_3(%arg0: i32, %arg1: i32) -> (i32, i32) {
    %c0_i32 = arith.constant 0 : i32
    %c0_i32_0 = arith.constant 0 : i32
    %c0_i32_1 = arith.constant 0 : i32
    return %c0_i32, %c0_i32_0 : i32, i32
  }
  func.func @transform_4(%arg0: i32, %arg1: i32) -> (i32, i32, i32) {
    %c0_i32 = arith.constant 0 : i32
    %c0_i32_0 = arith.constant 0 : i32
    return %arg0, %c0_i32, %arg1 : i32, i32, i32
  }
  func.func @transform_5(%arg0: i32, %arg1: i32) -> (i32, i32, i32) {
    %c0_i32 = arith.constant 0 : i32
    %c0_i32_0 = arith.constant 0 : i32
    return %arg0, %c0_i32, %arg1 : i32, i32, i32
  }
  func.func @transform_6(%arg0: i32, %arg1: i32) -> (i32, i32, i32) {
    %c0_i32 = arith.constant 0 : i32
    %c0_i32_0 = arith.constant 0 : i32
    return %arg0, %c0_i32, %arg1 : i32, i32, i32
  }
}

module attributes {stable_mosaic.version = 11 : i64} {
  func.func @_ssn_head_kernel(%arg0: i32, %arg1: i32, %arg2: memref<1x32x256xbf16, #tpu.memory_space<vmem>>, %arg3: memref<1x1x256xf32, #tpu.memory_space<vmem>>, %arg4: memref<40x32xbf16, #tpu.memory_space<vmem>>, %arg5: memref<40x1xf32, #tpu.memory_space<vmem>>, %arg6: memref<1x2x256xf32, #tpu.memory_space<vmem>>, %arg7: memref<1x2x256xf32, #tpu.memory_space<vmem>>, %arg8: memref<1x20x256xf32, #tpu.memory_space<vmem>>) attributes {dimension_semantics = [#tpu.dimension_semantics<parallel>, #tpu.dimension_semantics<parallel>], iteration_bounds = array<i64: 2, 1>, scalar_prefetch = 0 : i64, scratch_operands = 0 : i64, tpu.core_type = #tpu.core_type<tc>, window_params = [{transform_indices = @transform_0, window_bounds = array<i64: 1, 32, 256>}, {transform_indices = @transform_1, window_bounds = array<i64: 1, 1, 256>}, {pipeline_mode = #tpu.pipeline_mode<synchronous>, transform_indices = @transform_2, window_bounds = array<i64: 40, 32>}, {pipeline_mode = #tpu.pipeline_mode<synchronous>, transform_indices = @transform_3, window_bounds = array<i64: 40, 1>}, {transform_indices = @transform_4, window_bounds = array<i64: 1, 2, 256>}, {transform_indices = @transform_5, window_bounds = array<i64: 1, 2, 256>}, {transform_indices = @transform_6, window_bounds = array<i64: 1, 20, 256>}]} {
    %c0 = arith.constant 0 : index
    %c0_0 = arith.constant 0 : index
    %c0_1 = arith.constant 0 : index
    %0 = vector.load %arg2[%c0, %c0_0, %c0_1] : memref<1x32x256xbf16, #tpu.memory_space<vmem>>, vector<1x32x256xbf16>
    %1 = vector.shape_cast %0 : vector<1x32x256xbf16> to vector<32x256xbf16>
    %c0_2 = arith.constant 0 : index
    %c0_3 = arith.constant 0 : index
    %c0_4 = arith.constant 0 : index
    %2 = vector.load %arg3[%c0_2, %c0_3, %c0_4] : memref<1x1x256xf32, #tpu.memory_space<vmem>>, vector<1x1x256xf32>
    %3 = vector.shape_cast %2 : vector<1x1x256xf32> to vector<1x256xf32>
    %c0_5 = arith.constant 0 : index
    %c0_6 = arith.constant 0 : index
    %4 = vector.load %arg4[%c0_5, %c0_6] : memref<40x32xbf16, #tpu.memory_space<vmem>>, vector<40x32xbf16>
    %cst = arith.constant dense<0.000000e+00> : vector<40x256xf32>
    %5 = tpu.matmul %4, %1, %cst {dimension_numbers = #tpu.dot_dimension_numbers<[1], [0], [0], [1], [0, 0, 1, 1], [], []>} : vector<40x32xbf16>, vector<32x256xbf16>, vector<40x256xf32> -> vector<40x256xf32>
    %c0_7 = arith.constant 0 : index
    %c0_8 = arith.constant 0 : index
    %6 = vector.load %arg5[%c0_7, %c0_8] : memref<40x1xf32, #tpu.memory_space<vmem>>, vector<40x1xf32>
    %7 = vector.broadcast %6 : vector<40x1xf32> to vector<40x256xf32>
    %8 = arith.addf %5, %7 : vector<40x256xf32>
    %9 = vector.extract_strided_slice %8 {offsets = [0, 0], sizes = [2, 256], strides = [1, 1]} : vector<40x256xf32> to vector<2x256xf32>
    %c0_9 = arith.constant 0 : index
    %c0_10 = arith.constant 0 : index
    %c0_11 = arith.constant 0 : index
    %10 = vector.load %arg6[%c0_9, %c0_10, %c0_11] : memref<1x2x256xf32, #tpu.memory_space<vmem>>, vector<1x2x256xf32>
    %11 = vector.shape_cast %10 : vector<1x2x256xf32> to vector<2x256xf32>
    %12 = vector.shape_cast %9 : vector<2x256xf32> to vector<1x2x256xf32>
    tpu.vector_store %arg6[%c0_9, %c0_10, %c0_11], %12 {strides = array<i32>} : memref<1x2x256xf32, #tpu.memory_space<vmem>>, vector<1x2x256xf32>,
    %13 = vector.extract_strided_slice %8 {offsets = [8, 0], sizes = [2, 256], strides = [1, 1]} : vector<40x256xf32> to vector<2x256xf32>
    %14 = math.exp %13 : vector<2x256xf32>
    %cst_12 = arith.constant 9.99999974E-6 : f32
    %15 = vector.broadcast %cst_12 : f32 to vector<2x256xf32>
    %16 = arith.addf %14, %15 : vector<2x256xf32>
    %17 = vector.broadcast %3 : vector<1x256xf32> to vector<2x256xf32>
    %18 = arith.mulf %16, %17 : vector<2x256xf32>
    %cst_13 = arith.constant 9.99999974E-6 : f32
    %19 = vector.broadcast %cst_13 : f32 to vector<2x256xf32>
    %20 = arith.addf %18, %19 : vector<2x256xf32>
    %c0_14 = arith.constant 0 : index
    %c0_15 = arith.constant 0 : index
    %c0_16 = arith.constant 0 : index
    %21 = vector.load %arg7[%c0_14, %c0_15, %c0_16] : memref<1x2x256xf32, #tpu.memory_space<vmem>>, vector<1x2x256xf32>
    %22 = vector.shape_cast %21 : vector<1x2x256xf32> to vector<2x256xf32>
    %23 = vector.shape_cast %20 : vector<2x256xf32> to vector<1x2x256xf32>
    tpu.vector_store %arg7[%c0_14, %c0_15, %c0_16], %23 {strides = array<i32>} : memref<1x2x256xf32, #tpu.memory_space<vmem>>, vector<1x2x256xf32>,
    %24 = vector.extract_strided_slice %8 {offsets = [16, 0], sizes = [20, 256], strides = [1, 1]} : vector<40x256xf32> to vector<20x256xf32>
    %25 = vector.broadcast %3 : vector<1x256xf32> to vector<20x256xf32>
    %26 = arith.mulf %24, %25 : vector<20x256xf32>
    %c0_17 = arith.constant 0 : index
    %c0_18 = arith.constant 0 : index
    %c0_19 = arith.constant 0 : index
    %27 = vector.load %arg8[%c0_17, %c0_18, %c0_19] : memref<1x20x256xf32, #tpu.memory_space<vmem>>, vector<1x20x256xf32>
    %28 = vector.shape_cast %27 : vector<1x20x256xf32> to vector<20x256xf32>
    %29 = vector.shape_cast %26 : vector<20x256xf32> to vector<1x20x256xf32>
    tpu.vector_store %arg8[%c0_17, %c0_18, %c0_19], %29 {strides = array<i32>} : memref<1x20x256xf32, #tpu.memory_space<vmem>>, vector<1x20x256xf32>,
    return
  }
  func.func @transform_0(%arg0: i32, %arg1: i32) -> (i32, i32, i32) {
    %c0_i32 = arith.constant 0 : i32
    %c0_i32_0 = arith.constant 0 : i32
    return %arg0, %c0_i32, %arg1 : i32, i32, i32
  }
  func.func @transform_1(%arg0: i32, %arg1: i32) -> (i32, i32, i32) {
    %c0_i32 = arith.constant 0 : i32
    %c0_i32_0 = arith.constant 0 : i32
    return %arg0, %c0_i32, %arg1 : i32, i32, i32
  }
  func.func @transform_2(%arg0: i32, %arg1: i32) -> (i32, i32) {
    %c0_i32 = arith.constant 0 : i32
    %c0_i32_0 = arith.constant 0 : i32
    %c0_i32_1 = arith.constant 0 : i32
    return %c0_i32, %c0_i32_0 : i32, i32
  }
  func.func @transform_3(%arg0: i32, %arg1: i32) -> (i32, i32) {
    %c0_i32 = arith.constant 0 : i32
    %c0_i32_0 = arith.constant 0 : i32
    %c0_i32_1 = arith.constant 0 : i32
    return %c0_i32, %c0_i32_0 : i32, i32
  }
  func.func @transform_4(%arg0: i32, %arg1: i32) -> (i32, i32, i32) {
    %c0_i32 = arith.constant 0 : i32
    %c0_i32_0 = arith.constant 0 : i32
    return %arg0, %c0_i32, %arg1 : i32, i32, i32
  }
  func.func @transform_5(%arg0: i32, %arg1: i32) -> (i32, i32, i32) {
    %c0_i32 = arith.constant 0 : i32
    %c0_i32_0 = arith.constant 0 : i32
    return %arg0, %c0_i32, %arg1 : i32, i32, i32
  }
  func.func @transform_6(%arg0: i32, %arg1: i32) -> (i32, i32, i32) {
    %c0_i32 = arith.constant 0 : i32
    %c0_i32_0 = arith.constant 0 : i32
    return %arg0, %c0_i32, %arg1 : i32, i32, i32
  }
}

</mosaic_0001>

<llo_original>
// kernel: ssn_wrapped_deep_supervision_forward.2
$region0: #{ssn_wrapped_deep_supervision_forward.2}
  #allocation0 [shape = 'u32[]', space=smem, size = 0x4, offset = 0x4, fixed_abs, tag = 'smem constant byte address 0x4 - core index']
  #allocation1 [shape = 'u32[144,128]{1,0:T(1,128)}', space=vmem, size = 0x12000, scoped, tag = 'internal scratch']
  %s0 = inlined_call_operand.vmem [shape: bf16[2,32,1024], index: 0, kind: input, shape index: {}]
  %s1 = inlined_call_operand.vmem [shape: f32[2,1,1024], index: 1, kind: input, shape index: {}]
  %s2 = inlined_call_operand.vmem [shape: bf16[40,32], index: 2, kind: input, shape index: {}]
  %s3 = inlined_call_operand.vmem [shape: f32[40,1], index: 3, kind: input, shape index: {}]
  %s4 = inlined_call_operand.vmem [shape: f32[2,2,1024], index: 4, kind: output, shape index: {0}]
  %s5 = inlined_call_operand.vmem [shape: f32[2,2,1024], index: 5, kind: output, shape index: {1}]
  %s6 = inlined_call_operand.vmem [shape: f32[2,20,1024], index: 6, kind: output, shape index: {2}]
  %7 = xla_tuple %s4, %s5, %s6
  %s8 = sld [smem:[#allocation0]]
  $region65: #{ssn_wrapped_deep_supervision_forward.2} parent=0
    _
  %s10 = ssub.s32 1, %s8
  %s11 = scalar_select 0, %s10, %s8
  loop: start=0, step=1, limit=4
  $region2: #{ssn_wrapped_deep_supervision_forward.2} parent=0 // loop_pre_header
    _
  $region3: #{ssn_wrapped_deep_supervision_forward.2} parent=0 // loop_header
    %s13 = sphi 0, %s17
    %p14 = scmp.ge.s32.totalorder %s13, 4
    %s20 = sphi 0, %s32
    %s21 = sphi 0, %s28
    %s22 = sphi 0, %s20
    %s23 = sphi 0, %s21
    %s24 = sphi 0, %s22
    %s25 = sphi 0, %s23
    %s37 = sphi 0, %s39
    %s40 = sphi 0, %s37
    %s41 = sphi 0, %s40
    %s57 = sphi 0, %s41
    %s65 = sphi 0, %s67
    %s68 = sphi 0, %s65
    %s69 = sphi 0, %s68
    %s85 = sphi 0, %s69
    %s89 = sphi 0, %s89
    %s91 = sphi 0, %s89
    %s92 = sphi 0, %s91
    %s106 = sphi 0, %s92
    %s110 = sphi 0, %s110
    %s112 = sphi 0, %s110
    %s113 = sphi 0, %s112
    %s127 = sphi 0, %s113
    %s135 = sphi 0, %s137
    %s138 = sphi 0, %s135
    %s139 = sphi 0, %s138
    %s155 = sphi 0, %s139
    %s163 = sphi 0, %s165
    %s166 = sphi 0, %s163
    %s167 = sphi 0, %s166
    %s183 = sphi 0, %s167
    %s191 = sphi 0, %s193
    %s194 = sphi 0, %s191
    %s195 = sphi 0, %s194
    %s211 = sphi 0, %s195
  $region4: #{ssn_wrapped_deep_supervision_forward.2} parent=0 // loop_header_branch
    %16 = sbr.rel (%p14) target = $region8
  $region5: #{ssn_wrapped_deep_supervision_forward.2} parent=0 // loop_body
    %s18 = ssub.s32 %s13, 1
    %s19 = ssub.s32 %s13, 2
    %s26 = sadd.s32 1, %s21
    %p27 = scmp.ge.s32.totalorder %s26, 1
    %s28 = scalar_select %p27, 0, %s26
    %s29 = sadd.s32 1, %s20
    %s30 = scalar_select %p27, %s29, %s20
    %p31 = scmp.ge.s32.totalorder %s30, 2
    %s32 = scalar_select %p31, 0, %s30
    %s33 = ssub.s32 %s20, %s32
    %s34 = ssub.s32 %s21, %s28
    %s35 = sor.u32 %s33, %s34
    %p36 = scmp.eq.s32.totalorder %s35, 0
    %s38 = sadd.s32 %s37, 1
    %s39 = scalar_select %p36, %s37, %s38
    %p42 = pneg %p36
    %p43 = scmp.eq.s32.totalorder %s13, 1
    %p44 = por %p42, %p43
    %p45 = scmp.ne.s32.totalorder %s37, %s40
    %p46 = scmp.eq.s32.totalorder %s13, 0
    %p47 = por %p45, %p46
    %p48 = scmp.ne.s32.totalorder %s37, %s40
    %p49 = scmp.eq.s32.totalorder %s18, 1
    %p50 = por %p48, %p49
    %p51 = scmp.ne.s32.totalorder %s40, %s41
    %p52 = scmp.eq.s32.totalorder %s18, 0
    %p53 = por %p51, %p52
    %p54 = scmp.ne.s32.totalorder %s40, %s41
    %p55 = scmp.eq.s32.totalorder %s19, 1
    %p56 = por %p54, %p55
    %p58 = scmp.ne.s32.totalorder %s41, %s57
    %p59 = scmp.eq.s32.totalorder %s19, 0
    %p60 = por %p58, %p59
    %s61 = ssub.s32 %s20, %s32
    %s62 = ssub.s32 %s21, %s28
    %s63 = sor.u32 %s61, %s62
    %p64 = scmp.eq.s32.totalorder %s63, 0
    %s66 = sadd.s32 %s65, 1
    %s67 = scalar_select %p64, %s65, %s66
    %p70 = pneg %p64
    %p71 = scmp.eq.s32.totalorder %s13, 1
    %p72 = por %p70, %p71
    %p73 = scmp.ne.s32.totalorder %s65, %s68
    %p74 = scmp.eq.s32.totalorder %s13, 0
    %p75 = por %p73, %p74
    %p76 = scmp.ne.s32.totalorder %s65, %s68
    %p77 = scmp.eq.s32.totalorder %s18, 1
    %p78 = por %p76, %p77
    %p79 = scmp.ne.s32.totalorder %s68, %s69
    %p80 = scmp.eq.s32.totalorder %s18, 0
    %p81 = por %p79, %p80
    %p82 = scmp.ne.s32.totalorder %s68, %s69
    %p83 = scmp.eq.s32.totalorder %s19, 1
    %p84 = por %p82, %p83
    %p86 = scmp.ne.s32.totalorder %s69, %s85
    %p87 = scmp.eq.s32.totalorder %s19, 0
    %p88 = por %p86, %p87
    %s90 = sadd.s32 %s89, 1
    %p93 = scmp.eq.s32.totalorder %s13, 1
    %p94 = scmp.ne.s32.totalorder %s89, %s91
    %p95 = scmp.eq.s32.totalorder %s13, 0
    %p96 = por %p94, %p95
    %p97 = scmp.ne.s32.totalorder %s89, %s91
    %p98 = scmp.eq.s32.totalorder %s18, 1
    %p99 = por %p97, %p98
    %p100 = scmp.ne.s32.totalorder %s91, %s92
    %p101 = scmp.eq.s32.totalorder %s18, 0
    %p102 = por %p100, %p101
    %p103 = scmp.ne.s32.totalorder %s91, %s92
    %p104 = scmp.eq.s32.totalorder %s19, 1
    %p105 = por %p103, %p104
    %p107 = scmp.ne.s32.totalorder %s92, %s106
    %p108 = scmp.eq.s32.totalorder %s19, 0
    %p109 = por %p107, %p108
    %s111 = sadd.s32 %s110, 1
    %p114 = scmp.eq.s32.totalorder %s13, 1
    %p115 = scmp.ne.s32.totalorder %s110, %s112
    %p116 = scmp.eq.s32.totalorder %s13, 0
    %p117 = por %p115, %p116
    %p118 = scmp.ne.s32.totalorder %s110, %s112
    %p119 = scmp.eq.s32.totalorder %s18, 1
    %p120 = por %p118, %p119
    %p121 = scmp.ne.s32.totalorder %s112, %s113
    %p122 = scmp.eq.s32.totalorder %s18, 0
    %p123 = por %p121, %p122
    %p124 = scmp.ne.s32.totalorder %s112, %s113
    %p125 = scmp.eq.s32.totalorder %s19, 1
    %p126 = por %p124, %p125
    %p128 = scmp.ne.s32.totalorder %s113, %s127
    %p129 = scmp.eq.s32.totalorder %s19, 0
    %p130 = por %p128, %p129
    %s131 = ssub.s32 %s20, %s32
    %s132 = ssub.s32 %s21, %s28
    %s133 = sor.u32 %s131, %s132
    %p134 = scmp.eq.s32.totalorder %s133, 0
    %s136 = sadd.s32 %s135, 1
    %s137 = scalar_select %p134, %s135, %s136
    %p140 = pneg %p134
    %p141 = scmp.eq.s32.totalorder %s13, 1
    %p142 = por %p140, %p141
    %p143 = scmp.ne.s32.totalorder %s135, %s138
    %p144 = scmp.eq.s32.totalorder %s13, 0
    %p145 = por %p143, %p144
    %p146 = scmp.ne.s32.totalorder %s135, %s138
    %p147 = scmp.eq.s32.totalorder %s18, 1
    %p148 = por %p146, %p147
    %p149 = scmp.ne.s32.totalorder %s138, %s139
    %p150 = scmp.eq.s32.totalorder %s18, 0
    %p151 = por %p149, %p150
    %p152 = scmp.ne.s32.totalorder %s138, %s139
    %p153 = scmp.eq.s32.totalorder %s19, 1
    %p154 = por %p152, %p153
    %p156 = scmp.ne.s32.totalorder %s139, %s155
    %p157 = scmp.eq.s32.totalorder %s19, 0
    %p158 = por %p156, %p157
    %s159 = ssub.s32 %s20, %s32
    %s160 = ssub.s32 %s21, %s28
    %s161 = sor.u32 %s159, %s160
    %p162 = scmp.eq.s32.totalorder %s161, 0
    %s164 = sadd.s32 %s163, 1
    %s165 = scalar_select %p162, %s163, %s164
    %p168 = pneg %p162
    %p169 = scmp.eq.s32.totalorder %s13, 1
    %p170 = por %p168, %p169
    %p171 = scmp.ne.s32.totalorder %s163, %s166
    %p172 = scmp.eq.s32.totalorder %s13, 0
    %p173 = por %p171, %p172
    %p174 = scmp.ne.s32.totalorder %s163, %s166
    %p175 = scmp.eq.s32.totalorder %s18, 1
    %p176 = por %p174, %p175
    %p177 = scmp.ne.s32.totalorder %s166, %s167
    %p178 = scmp.eq.s32.totalorder %s18, 0
    %p179 = por %p177, %p178
    %p180 = scmp.ne.s32.totalorder %s166, %s167
    %p181 = scmp.eq.s32.totalorder %s19, 1
    %p182 = por %p180, %p181
    %p184 = scmp.ne.s32.totalorder %s167, %s183
    %p185 = scmp.eq.s32.totalorder %s19, 0
    %p186 = por %p184, %p185
    %s187 = ssub.s32 %s20, %s32
    %s188 = ssub.s32 %s21, %s28
    %s189 = sor.u32 %s187, %s188
    %p190 = scmp.eq.s32.totalorder %s189, 0
    %s192 = sadd.s32 %s191, 1
    %s193 = scalar_select %p190, %s191, %s192
    %p196 = pneg %p190
    %p197 = scmp.eq.s32.totalorder %s13, 1
    %p198 = por %p196, %p197
    %p199 = scmp.ne.s32.totalorder %s191, %s194
    %p200 = scmp.eq.s32.totalorder %s13, 0
    %p201 = por %p199, %p200
    %p202 = scmp.ne.s32.totalorder %s191, %s194
    %p203 = scmp.eq.s32.totalorder %s18, 1
    %p204 = por %p202, %p203
    %p205 = scmp.ne.s32.totalorder %s194, %s195
    %p206 = scmp.eq.s32.totalorder %s18, 0
    %p207 = por %p205, %p206
    %p208 = scmp.ne.s32.totalorder %s194, %s195
    %p209 = scmp.eq.s32.totalorder %s19, 1
    %p210 = por %p208, %p209
    %p212 = scmp.ne.s32.totalorder %s195, %s211
    %p213 = scmp.eq.s32.totalorder %s19, 0
    %p214 = por %p212, %p213
    %p215 = scmp.le.s32.totalorder 1, %s13
    %p216 = scmp.lt.s32.totalorder %s13, 3
    %p217 = pnand %p215, %p216
    %p218 = pneg %p217
    // Predicated region
    $region9: #{ssn_wrapped_deep_supervision_forward.2} parent=5 // pred_check
      _
    $region10: #{ssn_wrapped_deep_supervision_forward.2} parent=5 // pred_check_branch
      %220 = sbr.rel (%p217) target = $region12
    $region11: #{ssn_wrapped_deep_supervision_forward.2} parent=5 // pred_region
      %s221 = ssub.s32 %s13, 1
      // Predicated region
      $region13: #{ssn_wrapped_deep_supervision_forward.2} parent=11 // pred_check
        %p222 = pneg %p102
      $region14: #{ssn_wrapped_deep_supervision_forward.2} parent=11 // pred_check_branch
        %224 = sbr.rel (%p222) target = $region16
      $region15: #{ssn_wrapped_deep_supervision_forward.2} parent=11 // pred_region
        _
      $region16: #{ssn_wrapped_deep_supervision_forward.2} parent=11 // pred_fallthru
        _
      // Predicated region
      $region17: #{ssn_wrapped_deep_supervision_forward.2} parent=11 // pred_check
        %p225 = pneg %p123
      $region18: #{ssn_wrapped_deep_supervision_forward.2} parent=11 // pred_check_branch
        %227 = sbr.rel (%p225) target = $region20
      $region19: #{ssn_wrapped_deep_supervision_forward.2} parent=11 // pred_region
        _
      $region20: #{ssn_wrapped_deep_supervision_forward.2} parent=11 // pred_fallthru
        _
    $region12: #{ssn_wrapped_deep_supervision_forward.2} parent=5 // pred_fallthru
      _
    %p228 = scmp.lt.s32.totalorder %s13, 2
    // Predicated region
    $region21: #{ssn_wrapped_deep_supervision_forward.2} parent=5 // pred_check
      %p229 = pneg %p228
    $region22: #{ssn_wrapped_deep_supervision_forward.2} parent=5 // pred_check_branch
      %231 = sbr.rel (%p229) target = $region24
    $region23: #{ssn_wrapped_deep_supervision_forward.2} parent=5 // pred_region
      // Predicated region
      $region25: #{ssn_wrapped_deep_supervision_forward.2} parent=23 // pred_check
        %p232 = pneg %p47
      $region26: #{ssn_wrapped_deep_supervision_forward.2} parent=23 // pred_check_branch
        %234 = sbr.rel (%p232) target = $region28
      $region27: #{ssn_wrapped_deep_supervision_forward.2} parent=23 // pred_region
        %s235 = smul.u32 8, %s21
        %p236 = scmp.lt.s32.totalorder %s20, 1
        %s237 = scalar_select %p236, %s20, 1
        %p238 = scmp.lt.s32.totalorder %s235, 7
        %s239 = scalar_select %p238, %s235, 7
        %s240 = smul.addr %s237, 32
        %s241 = sadd.s32 %s239, %s240
        %s242 = smul.addr %s241, 4
        %s243 = scalar_lea.vmem %s0, %s242
        %s244 = smul.u32 8, %s21
      $region28: #{ssn_wrapped_deep_supervision_forward.2} parent=23 // pred_fallthru
        _
      // Predicated region
      $region29: #{ssn_wrapped_deep_supervision_forward.2} parent=23 // pred_check
        %p245 = pneg %p75
      $region30: #{ssn_wrapped_deep_supervision_forward.2} parent=23 // pred_check_branch
        %247 = sbr.rel (%p245) target = $region32
      $region31: #{ssn_wrapped_deep_supervision_forward.2} parent=23 // pred_region
        %s248 = smul.u32 8, %s21
        %p249 = scmp.lt.s32.totalorder %s20, 1
        %s250 = scalar_select %p249, %s20, 1
        %p251 = scmp.lt.s32.totalorder %s248, 7
        %s252 = scalar_select %p251, %s248, 7
        %s253 = smul.addr %s250, 8
        %s254 = sadd.s32 %s252, %s253
        %s255 = scalar_lea.vmem %s1, %s254
        %s256 = smul.u32 8, %s21
      $region32: #{ssn_wrapped_deep_supervision_forward.2} parent=23 // pred_fallthru
        _
    $region24: #{ssn_wrapped_deep_supervision_forward.2} parent=5 // pred_fallthru
      _
    %p257 = scmp.le.s32.totalorder 1, %s13
    %p258 = scmp.lt.s32.totalorder %s13, 3
    %p259 = pnand %p257, %p258
    %p260 = pneg %p259
    // Predicated region
    $region33: #{ssn_wrapped_deep_supervision_forward.2} parent=5 // pred_check
      _
    $region34: #{ssn_wrapped_deep_supervision_forward.2} parent=5 // pred_check_branch
      %262 = sbr.rel (%p259) target = $region36
    $region35: #{ssn_wrapped_deep_supervision_forward.2} parent=5 // pred_region
      %s263 = ssub.s32 %s13, 1
      %s264 = smul.u32 8, %s23
      %p265 = scmp.lt.s32.totalorder %s22, 1
      %s266 = scalar_select %p265, %s22, 1
      %p267 = scmp.lt.s32.totalorder %s264, 7
      %s268 = scalar_select %p267, %s264, 7
      %s269 = smul.addr %s266, 32
      %s270 = sadd.s32 %s268, %s269
      %s271 = smul.addr %s270, 4
      %s272 = scalar_lea.vmem %s0, %s271
      %p273 = pneg %p53
      %p274 = pneg %p50
      %s275 = smul.u32 8, %s23
      %p276 = scmp.lt.s32.totalorder %s22, 1
      %s277 = scalar_select %p276, %s22, 1
      %p278 = scmp.lt.s32.totalorder %s275, 7
      %s279 = scalar_select %p278, %s275, 7
      %s280 = smul.addr %s277, 8
      %s281 = sadd.s32 %s279, %s280
      %s282 = scalar_lea.vmem %s1, %s281
      %p283 = pneg %p81
      %p284 = pneg %p78
      %p285 = pneg %p102
      %p286 = pneg %p99
      %p287 = pneg %p123
      %p288 = pneg %p120
      %p289 = pneg %p151
      %p290 = pneg %p148
      %s291 = smul.u32 8, %s23
      %p292 = scmp.lt.s32.totalorder %s22, 1
      %s293 = scalar_select %p292, %s22, 1
      %p294 = scmp.lt.s32.totalorder %s291, 7
      %s295 = scalar_select %p294, %s291, 7
      %s296 = smul.addr %s293, 8
      %s297 = sadd.s32 %s295, %s296
      %s298 = smul.addr %s297, 2
      %s299 = scalar_lea.vmem %s4, %s298
      %p300 = pneg %p179
      %p301 = pneg %p176
      %s302 = smul.u32 8, %s23
      %p303 = scmp.lt.s32.totalorder %s22, 1
      %s304 = scalar_select %p303, %s22, 1
      %p305 = scmp.lt.s32.totalorder %s302, 7
      %s306 = scalar_select %p305, %s302, 7
      %s307 = smul.addr %s304, 8
      %s308 = sadd.s32 %s306, %s307
      %s309 = smul.addr %s308, 2
      %s310 = scalar_lea.vmem %s5, %s309
      %p311 = pneg %p207
      %p312 = pneg %p204
      %s313 = smul.u32 8, %s23
      %p314 = scmp.lt.s32.totalorder %s22, 1
      %s315 = scalar_select %p314, %s22, 1
      %p316 = scmp.lt.s32.totalorder %s313, 7
      %s317 = scalar_select %p316, %s313, 7
      %s318 = smul.addr %s315, 24
      %s319 = sadd.s32 %s317, %s318
      %s320 = smul.addr %s319, 8
      %s321 = scalar_lea.vmem %s6, %s320
      %s322 = smul.u32 8, %s23
      %p323 = scmp.lt.s32.totalorder %s22, 1
      %s324 = scalar_select %p323, %s22, 1
      %p325 = scmp.lt.s32.totalorder %s322, 7
      %s326 = scalar_select %p325, %s322, 7
      %s327 = smul.addr %s324, 32
      %s328 = sadd.s32 %s326, %s327
      %s329 = smul.addr %s328, 4
      %s330 = scalar_lea.vmem %s0, %s329
      %s331 = smul.u32 8, %s23
      %s332 = smul.u32 8, %s23
      %p333 = scmp.lt.s32.totalorder %s22, 1
      %s334 = scalar_select %p333, %s22, 1
      %p335 = scmp.lt.s32.totalorder %s332, 7
      %s336 = scalar_select %p335, %s332, 7
      %s337 = smul.addr %s334, 8
      %s338 = sadd.s32 %s336, %s337
      %s339 = scalar_lea.vmem %s1, %s338
      %s340 = smul.u32 8, %s23
      %s341 = smul.u32 8, %s23
      %p342 = scmp.lt.s32.totalorder %s22, 1
      %s343 = scalar_select %p342, %s22, 1
      %p344 = scmp.lt.s32.totalorder %s341, 7
      %s345 = scalar_select %p344, %s341, 7
      %s346 = smul.addr %s343, 8
      %s347 = sadd.s32 %s345, %s346
      %s348 = smul.addr %s347, 2
      %s349 = scalar_lea.vmem %s4, %s348
      %s350 = smul.u32 8, %s23
      %s351 = smul.u32 8, %s23
      %p352 = scmp.lt.s32.totalorder %s22, 1
      %s353 = scalar_select %p352, %s22, 1
      %p354 = scmp.lt.s32.totalorder %s351, 7
      %s355 = scalar_select %p354, %s351, 7
      %s356 = smul.addr %s353, 8
      %s357 = sadd.s32 %s355, %s356
      %s358 = smul.addr %s357, 2
      %s359 = scalar_lea.vmem %s5, %s358
      %s360 = smul.u32 8, %s23
      %s361 = smul.u32 8, %s23
      %p362 = scmp.lt.s32.totalorder %s22, 1
      %s363 = scalar_select %p362, %s22, 1
      %p364 = scmp.lt.s32.totalorder %s361, 7
      %s365 = scalar_select %p364, %s361, 7
      %s366 = smul.addr %s363, 24
      %s367 = sadd.s32 %s365, %s366
      %s368 = smul.addr %s367, 8
      %s369 = scalar_lea.vmem %s6, %s368
      %s370 = smul.u32 8, %s23
      %v372 = vld [vmem:[%s330] sm:$0xff]
      %v373 = vld [vmem:[%s330 + $0x8] sm:$0xff]
      %v374 = vld [vmem:[%s330 + $0x10] sm:$0xff]
      %v375 = vld [vmem:[%s330 + $0x18] sm:$0xff]
      %v376 = vld [vmem:[%s330 + $0x20] sm:$0xff]
      %v377 = vld [vmem:[%s330 + $0x28] sm:$0xff]
      %v378 = vld [vmem:[%s330 + $0x30] sm:$0xff]
      %v379 = vld [vmem:[%s330 + $0x38] sm:$0xff]
      %v380 = vld [vmem:[%s330 + $0x40] sm:$0xff]
      %v381 = vld [vmem:[%s330 + $0x48] sm:$0xff]
      %v382 = vld [vmem:[%s330 + $0x50] sm:$0xff]
      %v383 = vld [vmem:[%s330 + $0x58] sm:$0xff]
      %v384 = vld [vmem:[%s330 + $0x60] sm:$0xff]
      %v385 = vld [vmem:[%s330 + $0x68] sm:$0xff]
      %v386 = vld [vmem:[%s330 + $0x70] sm:$0xff]
      %v387 = vld [vmem:[%s330 + $0x78] sm:$0xff]
      %v388 = vld [vmem:[%s339] sm:$0xff]
      %v389 = vld [vmem:[%s2] sm:$0xf]
      %v390 = vld [vmem:[%s2 + $0x4] sm:$0xf]
      %v391 = vld [vmem:[%s2 + $0x8] sm:$0xf]
      %v392 = vld [vmem:[%s2 + $0xc] sm:$0xf]
      %v393 = vld [vmem:[%s2 + $0x10] sm:$0xf]
      %v394 = vld [vmem:[%s3] sm:$0xff]
      %v395 = vld [vmem:[%s3 + $0x8] sm:$0xff]
      %v396 = vld [vmem:[%s3 + $0x10] sm:$0xff]
      %v397 = vld [vmem:[%s3 + $0x18] sm:$0xff]
      %v398 = vld [vmem:[%s3 + $0x20] sm:$0xff]
      %400 = vset.pattern.permute.xlu0 0
      %401 = vperm.xlu0 %400, %v394
      %v402 = vpop.permute.xlu0 %401
      %405 = vset.pattern.permute.xlu0 0
      %406 = vperm.xlu0 %405, %v395
      %v407 = vpop.permute.xlu0 %406
      %410 = vset.pattern.permute.xlu0 0
      %411 = vperm.xlu0 %410, %v396
      %v412 = vpop.permute.xlu0 %411
      %415 = vset.pattern.permute.xlu0 0
      %416 = vperm.xlu0 %415, %v397
      %v417 = vpop.permute.xlu0 %416
      %420 = vset.pattern.permute.xlu0 0
      %421 = vperm.xlu0 %420, %v398
      %v422 = vpop.permute.xlu0 %421
      %v429 = vunpack.c.l.b16 %v389
      %v430 = vunpack.c.l.b16 %v390
      %v431 = vunpack.c.l.b16 %v391
      %v432 = vunpack.c.l.b16 %v392
      %v433 = vunpack.c.l.b16 %v393
      %v434 = vpack.c.b16 %v430, %v429
      %v435 = vpack.c.b16 %v432, %v431
      %v436 = vpack.c.b16 %v433, %v433
      %v453 = vunpack.c.l.b16 %v372
      %v454 = vunpack.c.h.b16 %v372
      %v455 = vunpack.c.l.b16 %v373
      %v456 = vunpack.c.h.b16 %v373
      %v457 = vunpack.c.l.b16 %v374
      %v458 = vunpack.c.h.b16 %v374
      %v459 = vunpack.c.l.b16 %v375
      %v460 = vunpack.c.h.b16 %v375
      %v461 = vunpack.c.l.b16 %v376
      %v462 = vunpack.c.h.b16 %v376
      %v463 = vunpack.c.l.b16 %v377
      %v464 = vunpack.c.h.b16 %v377
      %v465 = vunpack.c.l.b16 %v378
      %v466 = vunpack.c.h.b16 %v378
      %v467 = vunpack.c.l.b16 %v379
      %v468 = vunpack.c.h.b16 %v379
      %v469 = vunpack.c.l.b16 %v380
      %v470 = vunpack.c.h.b16 %v380
      %v471 = vunpack.c.l.b16 %v381
      %v472 = vunpack.c.h.b16 %v381
      %v473 = vunpack.c.l.b16 %v382
      %v474 = vunpack.c.h.b16 %v382
      %v475 = vunpack.c.l.b16 %v383
      %v476 = vunpack.c.h.b16 %v383
      %v477 = vunpack.c.l.b16 %v384
      %v478 = vunpack.c.h.b16 %v384
      %v479 = vunpack.c.l.b16 %v385
      %v480 = vunpack.c.h.b16 %v385
      %v481 = vunpack.c.l.b16 %v386
      %v482 = vunpack.c.h.b16 %v386
      %v483 = vunpack.c.l.b16 %v387
      %v484 = vunpack.c.h.b16 %v387
      %v485 = vpack.c.b16 %v461, %v453
      %v486 = vpack.c.b16 %v462, %v454
      %v487 = vpack.c.b16 %v463, %v455
      %v488 = vpack.c.b16 %v464, %v456
      %v489 = vpack.c.b16 %v465, %v457
      %v490 = vpack.c.b16 %v466, %v458
      %v491 = vpack.c.b16 %v467, %v459
      %v492 = vpack.c.b16 %v468, %v460
      %v493 = vpack.c.b16 %v477, %v469
      %v494 = vpack.c.b16 %v478, %v470
      %v495 = vpack.c.b16 %v479, %v471
      %v496 = vpack.c.b16 %v480, %v472
      %v497 = vpack.c.b16 %v481, %v473
      %v498 = vpack.c.b16 %v482, %v474
      %v499 = vpack.c.b16 %v483, %v475
      %v500 = vpack.c.b16 %v484, %v476
      %vm517 = vcmask 261120
      %v519 = vsel %vm517, %v434, 0
      %v522 = vsel %vm517, %v435, 0
      %v525 = vsel %vm517, %v436, 0
      %527 = vmatprep.subr.bf16.mxu0 0
      %528 = vmatpush1.bf16.msra.mxu0 0
      %529 = vmatprep.subr.bf16.mxu0 0
      %530 = vmatpush1.bf16.msra.mxu0 0
      %531 = vmatprep.subr.bf16.mxu0 0
      %532 = vmatpush1.bf16.msra.mxu0 0
      %533 = vmatprep.subr.bf16.mxu0 0
      %534 = vmatpush1.bf16.msra.mxu0 0
      %535 = vmatprep.subr.bf16.mxu0 0
      %536 = vmatpush1.bf16.msra.mxu0 0
      %537 = vmatprep.subr.bf16.mxu0 0
      %538 = vmatpush1.bf16.msra.mxu0 0
      %539 = vmatprep.subr.bf16.mxu0 %v494
      %540 = vmatpush1.bf16.msra.mxu0 %v493
      %541 = vmatprep.subr.bf16.mxu0 %v486
      %542 = vmatpush1.bf16.msra.mxu0 %v485
      %543 = vmatprep.subr.bf16.mxu0 0
      %544 = vmatpush2.bf16.msra.mxu0 0
      %545 = vmatprep.subr.bf16.mxu0 0
      %546 = vmatpush2.bf16.msra.mxu0 0
      %547 = vmatprep.subr.bf16.mxu0 0
      %548 = vmatpush2.bf16.msra.mxu0 0
      %549 = vmatprep.subr.bf16.mxu0 0
      %550 = vmatpush2.bf16.msra.mxu0 0
      %551 = vmatprep.subr.bf16.mxu0 0
      %552 = vmatpush2.bf16.msra.mxu0 0
      %553 = vmatprep.subr.bf16.mxu0 0
      %554 = vmatpush2.bf16.msra.mxu0 0
      %555 = vmatprep.subr.bf16.mxu0 0
      %556 = vmatpush2.bf16.msra.mxu0 0
      %557 = vmatprep.subr.bf16.mxu0 0
      %558 = vmatpush2.bf16.msra.mxu0 0
      %559 = vmatprep.mubr.bf16.mxu0 0
      %560 = vmatmul.mubr.bf16.gmra.mxu0 %v519
      %v561 = vpop.f32.mrf.mxu0
      %v562 = vadd.f32 %v402, %v561
      %v563 = vpop.f32.mrf.mxu0
      %v564 = vadd.f32 %v402, %v563
      %v565 = vpop.f32.mrf.mxu0
      %v566 = vadd.f32 %v407, %v565
      %v567 = vpop.f32.mrf.mxu0
      %v568 = vadd.f32 %v407, %v567
      %569 = vmatprep.mubr.bf16.mxu0 0
      %570 = vmatmul.mubr.bf16.gmra.mxu0 %v522
      %v571 = vpop.f32.mrf.mxu0
      %v572 = vadd.f32 %v412, %v571
      %v573 = vpop.f32.mrf.mxu0
      %v574 = vadd.f32 %v412, %v573
      %v575 = vpop.f32.mrf.mxu0
      %v576 = vadd.f32 %v417, %v575
      %v577 = vpop.f32.mrf.mxu0
      %v578 = vadd.f32 %v417, %v577
      %579 = vmatprep.mubr.bf16.mxu0 0
      %580 = vmatmul.mubr.bf16.gmra.mxu0 %v525
      %v581 = vpop.f32.mrf.mxu0
      %v582 = vadd.f32 %v422, %v581
      %v583 = vpop.f32.mrf.mxu0
      %v584 = vadd.f32 %v422, %v583
      %v585 = vpop.f32.mrf.mxu0
      %v586 = vpop.f32.mrf.mxu0
      %587 = vdwg.mxu0
      %588 = vmatprep.subr.bf16.mxu0 0
      %589 = vmatpush1.bf16.msra.mxu0 0
      %590 = vmatprep.subr.bf16.mxu0 0
      %591 = vmatpush1.bf16.msra.mxu0 0
      %592 = vmatprep.subr.bf16.mxu0 0
      %593 = vmatpush1.bf16.msra.mxu0 0
      %594 = vmatprep.subr.bf16.mxu0 0
      %595 = vmatpush1.bf16.msra.mxu0 0
      %596 = vmatprep.subr.bf16.mxu0 0
      %597 = vmatpush1.bf16.msra.mxu0 0
      %598 = vmatprep.subr.bf16.mxu0 0
      %599 = vmatpush1.bf16.msra.mxu0 0
      %600 = vmatprep.subr.bf16.mxu0 %v496
      %601 = vmatpush1.bf16.msra.mxu0 %v495
      %602 = vmatprep.subr.bf16.mxu0 %v488
      %603 = vmatpush1.bf16.msra.mxu0 %v487
      %604 = vmatprep.subr.bf16.mxu0 0
      %605 = vmatpush2.bf16.msra.mxu0 0
      %606 = vmatprep.subr.bf16.mxu0 0
      %607 = vmatpush2.bf16.msra.mxu0 0
      %608 = vmatprep.subr.bf16.mxu0 0
      %609 = vmatpush2.bf16.msra.mxu0 0
      %610 = vmatprep.subr.bf16.mxu0 0
      %611 = vmatpush2.bf16.msra.mxu0 0
      %612 = vmatprep.subr.bf16.mxu0 0
      %613 = vmatpush2.bf16.msra.mxu0 0
      %614 = vmatprep.subr.bf16.mxu0 0
      %615 = vmatpush2.bf16.msra.mxu0 0
      %616 = vmatprep.subr.bf16.mxu0 0
      %617 = vmatpush2.bf16.msra.mxu0 0
      %618 = vmatprep.subr.bf16.mxu0 0
      %619 = vmatpush2.bf16.msra.mxu0 0
      %620 = vmatprep.mubr.bf16.mxu0 0
      %621 = vmatmul.mubr.bf16.gmra.mxu0 %v519
      %v622 = vpop.f32.mrf.mxu0
      %v623 = vadd.f32 %v402, %v622
      %v624 = vpop.f32.mrf.mxu0
      %v625 = vadd.f32 %v402, %v624
      %v626 = vpop.f32.mrf.mxu0
      %v627 = vadd.f32 %v407, %v626
      %v628 = vpop.f32.mrf.mxu0
      %v629 = vadd.f32 %v407, %v628
      %630 = vmatprep.mubr.bf16.mxu0 0
      %631 = vmatmul.mubr.bf16.gmra.mxu0 %v522
      %v632 = vpop.f32.mrf.mxu0
      %v633 = vadd.f32 %v412, %v632
      %v634 = vpop.f32.mrf.mxu0
      %v635 = vadd.f32 %v412, %v634
      %v636 = vpop.f32.mrf.mxu0
      %v637 = vadd.f32 %v417, %v636
      %v638 = vpop.f32.mrf.mxu0
      %v639 = vadd.f32 %v417, %v638
      %640 = vmatprep.mubr.bf16.mxu0 0
      %641 = vmatmul.mubr.bf16.gmra.mxu0 %v525
      %v642 = vpop.f32.mrf.mxu0
      %v643 = vadd.f32 %v422, %v642
      %v644 = vpop.f32.mrf.mxu0
      %v645 = vadd.f32 %v422, %v644
      %v646 = vpop.f32.mrf.mxu0
      %v647 = vpop.f32.mrf.mxu0
      %648 = vdwg.mxu0
      %649 = vmatprep.subr.bf16.mxu0 0
      %650 = vmatpush1.bf16.msra.mxu0 0
      %651 = vmatprep.subr.bf16.mxu0 0
      %652 = vmatpush1.bf16.msra.mxu0 0
      %653 = vmatprep.subr.bf16.mxu0 0
      %654 = vmatpush1.bf16.msra.mxu0 0
      %655 = vmatprep.subr.bf16.mxu0 0
      %656 = vmatpush1.bf16.msra.mxu0 0
      %657 = vmatprep.subr.bf16.mxu0 0
      %658 = vmatpush1.bf16.msra.mxu0 0
      %659 = vmatprep.subr.bf16.mxu0 0
      %660 = vmatpush1.bf16.msra.mxu0 0
      %661 = vmatprep.subr.bf16.mxu0 %v498
      %662 = vmatpush1.bf16.msra.mxu0 %v497
      %663 = vmatprep.subr.bf16.mxu0 %v490
      %664 = vmatpush1.bf16.msra.mxu0 %v489
      %665 = vmatprep.subr.bf16.mxu0 0
      %666 = vmatpush2.bf16.msra.mxu0 0
      %667 = vmatprep.subr.bf16.mxu0 0
      %668 = vmatpush2.bf16.msra.mxu0 0
      %669 = vmatprep.subr.bf16.mxu0 0
      %670 = vmatpush2.bf16.msra.mxu0 0
      %671 = vmatprep.subr.bf16.mxu0 0
      %672 = vmatpush2.bf16.msra.mxu0 0
      %673 = vmatprep.subr.bf16.mxu0 0
      %674 = vmatpush2.bf16.msra.mxu0 0
      %675 = vmatprep.subr.bf16.mxu0 0
      %676 = vmatpush2.bf16.msra.mxu0 0
      %677 = vmatprep.subr.bf16.mxu0 0
      %678 = vmatpush2.bf16.msra.mxu0 0
      %679 = vmatprep.subr.bf16.mxu0 0
      %680 = vmatpush2.bf16.msra.mxu0 0
      %681 = vmatprep.mubr.bf16.mxu0 0
      %682 = vmatmul.mubr.bf16.gmra.mxu0 %v519
      %v683 = vpop.f32.mrf.mxu0
      %v684 = vadd.f32 %v402, %v683
      %v685 = vpop.f32.mrf.mxu0
      %v686 = vadd.f32 %v402, %v685
      %v687 = vpop.f32.mrf.mxu0
      %v688 = vadd.f32 %v407, %v687
      %v689 = vpop.f32.mrf.mxu0
      %v690 = vadd.f32 %v407, %v689
      %691 = vmatprep.mubr.bf16.mxu0 0
      %692 = vmatmul.mubr.bf16.gmra.mxu0 %v522
      %v693 = vpop.f32.mrf.mxu0
      %v694 = vadd.f32 %v412, %v693
      %v695 = vpop.f32.mrf.mxu0
      %v696 = vadd.f32 %v412, %v695
      %v697 = vpop.f32.mrf.mxu0
      %v698 = vadd.f32 %v417, %v697
      %v699 = vpop.f32.mrf.mxu0
      %v700 = vadd.f32 %v417, %v699
      %701 = vmatprep.mubr.bf16.mxu0 0
      %702 = vmatmul.mubr.bf16.gmra.mxu0 %v525
      %v703 = vpop.f32.mrf.mxu0
      %v704 = vadd.f32 %v422, %v703
      %v705 = vpop.f32.mrf.mxu0
      %v706 = vadd.f32 %v422, %v705
      %v707 = vpop.f32.mrf.mxu0
      %v708 = vpop.f32.mrf.mxu0
      %709 = vdwg.mxu0
      %710 = vmatprep.subr.bf16.mxu0 0
      %711 = vmatpush1.bf16.msra.mxu0 0
      %712 = vmatprep.subr.bf16.mxu0 0
      %713 = vmatpush1.bf16.msra.mxu0 0
      %714 = vmatprep.subr.bf16.mxu0 0
      %715 = vmatpush1.bf16.msra.mxu0 0
      %716 = vmatprep.subr.bf16.mxu0 0
      %717 = vmatpush1.bf16.msra.mxu0 0
      %718 = vmatprep.subr.bf16.mxu0 0
      %719 = vmatpush1.bf16.msra.mxu0 0
      %720 = vmatprep.subr.bf16.mxu0 0
      %721 = vmatpush1.bf16.msra.mxu0 0
      %722 = vmatprep.subr.bf16.mxu0 %v500
      %723 = vmatpush1.bf16.msra.mxu0 %v499
      %724 = vmatprep.subr.bf16.mxu0 %v492
      %725 = vmatpush1.bf16.msra.mxu0 %v491
      %726 = vmatprep.subr.bf16.mxu0 0
      %727 = vmatpush2.bf16.msra.mxu0 0
      %728 = vmatprep.subr.bf16.mxu0 0
      %729 = vmatpush2.bf16.msra.mxu0 0
      %730 = vmatprep.subr.bf16.mxu0 0
      %731 = vmatpush2.bf16.msra.mxu0 0
      %732 = vmatprep.subr.bf16.mxu0 0
      %733 = vmatpush2.bf16.msra.mxu0 0
      %734 = vmatprep.subr.bf16.mxu0 0
      %735 = vmatpush2.bf16.msra.mxu0 0
      %736 = vmatprep.subr.bf16.mxu0 0
      %737 = vmatpush2.bf16.msra.mxu0 0
      %738 = vmatprep.subr.bf16.mxu0 0
      %739 = vmatpush2.bf16.msra.mxu0 0
      %740 = vmatprep.subr.bf16.mxu0 0
      %741 = vmatpush2.bf16.msra.mxu0 0
      %742 = vmatprep.mubr.bf16.mxu0 0
      %743 = vmatmul.mubr.bf16.gmra.mxu0 %v519
      %v744 = vpop.f32.mrf.mxu0
      %v745 = vadd.f32 %v402, %v744
      %v746 = vpop.f32.mrf.mxu0
      %v747 = vadd.f32 %v402, %v746
      %v748 = vpop.f32.mrf.mxu0
      %v749 = vadd.f32 %v407, %v748
      %v750 = vpop.f32.mrf.mxu0
      %v751 = vadd.f32 %v407, %v750
      %752 = vmatprep.mubr.bf16.mxu0 0
      %753 = vmatmul.mubr.bf16.gmra.mxu0 %v522
      %v754 = vpop.f32.mrf.mxu0
      %v755 = vadd.f32 %v412, %v754
      %v756 = vpop.f32.mrf.mxu0
      %v757 = vadd.f32 %v412, %v756
      %v758 = vpop.f32.mrf.mxu0
      %v759 = vadd.f32 %v417, %v758
      %v760 = vpop.f32.mrf.mxu0
      %v761 = vadd.f32 %v417, %v760
      %762 = vmatprep.mubr.bf16.mxu0 0
      %763 = vmatmul.mubr.bf16.gmra.mxu0 %v525
      %v764 = vpop.f32.mrf.mxu0
      %v765 = vadd.f32 %v422, %v764
      %v766 = vpop.f32.mrf.mxu0
      %v767 = vadd.f32 %v422, %v766
      %v768 = vpop.f32.mrf.mxu0
      %v769 = vpop.f32.mrf.mxu0
      %770 = vdwg.mxu0
      %v779 = vcombine.low %v562, %v564
      %v780 = vcombine.low %v623, %v625
      %v782 = vunpack.c.l.s4 1983009808
      %v783 = vunpack.c.0.s8 %v782
      %v784 = vlaneseq
      %v785 = vshrl.u32 %v784, 7
      %v786 = vsub.s32 %v783, %v785
      %v787 = vrot.slane %v779, %v786
      %v789 = vunpack.c.l.s4 1983009808
      %v790 = vunpack.c.0.s8 %v789
      %v791 = vlaneseq
      %v792 = vshrl.u32 %v791, 7
      %v793 = vsub.s32 %v790, %v792
      %v794 = vrot.slane %v780, %v793
      %v795 = vcombine.low %v787, %v794
      %v796 = vcombine.low %v684, %v686
      %v797 = vcombine.low %v745, %v747
      %v799 = vunpack.c.l.s4 1983009808
      %v800 = vunpack.c.0.s8 %v799
      %v801 = vlaneseq
      %v802 = vshrl.u32 %v801, 7
      %v803 = vsub.s32 %v800, %v802
      %v804 = vrot.slane %v796, %v803
      %v806 = vunpack.c.l.s4 1983009808
      %v807 = vunpack.c.0.s8 %v806
      %v808 = vlaneseq
      %v809 = vshrl.u32 %v808, 7
      %v810 = vsub.s32 %v807, %v809
      %v811 = vrot.slane %v797, %v810
      %v812 = vcombine.low %v804, %v811
      %815 = vst [vmem:[%s349] sm:$0xff] %v795
      %816 = vst [vmem:[%s349 + $0x8] sm:$0xff] %v812
      %v817 = vmul.f32 %v566, 1.442695
      %v818 = vpow.pop %v817
      %v819 = vmul.f32 %v568, 1.442695
      %v820 = vpow.pop %v819
      %v821 = vmul.f32 %v627, 1.442695
      %v822 = vpow.pop %v821
      %v823 = vmul.f32 %v629, 1.442695
      %v824 = vpow.pop %v823
      %v825 = vmul.f32 %v688, 1.442695
      %v826 = vpow.pop %v825
      %v827 = vmul.f32 %v690, 1.442695
      %v828 = vpow.pop %v827
      %v829 = vmul.f32 %v749, 1.442695
      %v830 = vpow.pop %v829
      %v831 = vmul.f32 %v751, 1.442695
      %v832 = vpow.pop %v831
      %v833 = vadd.f32 %v818, 1e-05
      %v834 = vadd.f32 %v820, 1e-05
      %v835 = vadd.f32 %v822, 1e-05
      %v836 = vadd.f32 %v824, 1e-05
      %v837 = vadd.f32 %v826, 1e-05
      %v838 = vadd.f32 %v828, 1e-05
      %v839 = vadd.f32 %v830, 1e-05
      %v840 = vadd.f32 %v832, 1e-05
      %v842 = vlaneseq
      %v843 = vshrl.u32 %v842, 7
      %v844 = vsub.s32 0, %v843
      %v845 = vrot.slane %v388, %v844
      %v846 = vlaneseq
      %v847 = vshrl.u32 %v846, 7
      %v848 = vsub.s32 1, %v847
      %v849 = vrot.slane %v388, %v848
      %v850 = vlaneseq
      %v851 = vshrl.u32 %v850, 7
      %v852 = vsub.s32 2, %v851
      %v853 = vrot.slane %v388, %v852
      %v854 = vlaneseq
      %v855 = vshrl.u32 %v854, 7
      %v856 = vsub.s32 3, %v855
      %v857 = vrot.slane %v388, %v856
      %v858 = vlaneseq
      %v859 = vshrl.u32 %v858, 7
      %v860 = vsub.s32 4, %v859
      %v861 = vrot.slane %v388, %v860
      %v862 = vlaneseq
      %v863 = vshrl.u32 %v862, 7
      %v864 = vsub.s32 5, %v863
      %v865 = vrot.slane %v388, %v864
      %v866 = vlaneseq
      %v867 = vshrl.u32 %v866, 7
      %v868 = vsub.s32 6, %v867
      %v869 = vrot.slane %v388, %v868
      %v870 = vlaneseq
      %v871 = vshrl.u32 %v870, 7
      %v872 = vsub.s32 7, %v871
      %v873 = vrot.slane %v388, %v872
      %v882 = vmul.f32 %v833, %v845
      %v883 = vmul.f32 %v834, %v849
      %v884 = vmul.f32 %v835, %v853
      %v885 = vmul.f32 %v836, %v857
      %v886 = vmul.f32 %v837, %v861
      %v887 = vmul.f32 %v838, %v865
      %v888 = vmul.f32 %v839, %v869
      %v889 = vmul.f32 %v840, %v873
      %v890 = vadd.f32 %v882, 1e-05
      %v891 = vadd.f32 %v883, 1e-05
      %v892 = vadd.f32 %v884, 1e-05
      %v893 = vadd.f32 %v885, 1e-05
      %v894 = vadd.f32 %v886, 1e-05
      %v895 = vadd.f32 %v887, 1e-05
      %v896 = vadd.f32 %v888, 1e-05
      %v897 = vadd.f32 %v889, 1e-05
      %v906 = vcombine.low %v890, %v891
      %v907 = vcombine.low %v892, %v893
      %v909 = vunpack.c.l.s4 1983009808
      %v910 = vunpack.c.0.s8 %v909
      %v911 = vlaneseq
      %v912 = vshrl.u32 %v911, 7
      %v913 = vsub.s32 %v910, %v912
      %v914 = vrot.slane %v906, %v913
      %v916 = vunpack.c.l.s4 1983009808
      %v917 = vunpack.c.0.s8 %v916
      %v918 = vlaneseq
      %v919 = vshrl.u32 %v918, 7
      %v920 = vsub.s32 %v917, %v919
      %v921 = vrot.slane %v907, %v920
      %v922 = vcombine.low %v914, %v921
      %v923 = vcombine.low %v894, %v895
      %v924 = vcombine.low %v896, %v897
      %v926 = vunpack.c.l.s4 1983009808
      %v927 = vunpack.c.0.s8 %v926
      %v928 = vlaneseq
      %v929 = vshrl.u32 %v928, 7
      %v930 = vsub.s32 %v927, %v929
      %v931 = vrot.slane %v923, %v930
      %v933 = vunpack.c.l.s4 1983009808
      %v934 = vunpack.c.0.s8 %v933
      %v935 = vlaneseq
      %v936 = vshrl.u32 %v935, 7
      %v937 = vsub.s32 %v934, %v936
      %v938 = vrot.slane %v924, %v937
      %v939 = vcombine.low %v931, %v938
      %942 = vst [vmem:[%s359] sm:$0xff] %v922
      %943 = vst [vmem:[%s359 + $0x8] sm:$0xff] %v939
      %v944 = vmul.f32 %v572, %v845
      %v945 = vmul.f32 %v574, %v849
      %v946 = vmul.f32 %v633, %v853
      %v947 = vmul.f32 %v635, %v857
      %v948 = vmul.f32 %v694, %v861
      %v949 = vmul.f32 %v696, %v865
      %v950 = vmul.f32 %v755, %v869
      %v951 = vmul.f32 %v757, %v873
      %v952 = vmul.f32 %v576, %v845
      %v953 = vmul.f32 %v578, %v849
      %v954 = vmul.f32 %v637, %v853
      %v955 = vmul.f32 %v639, %v857
      %v956 = vmul.f32 %v698, %v861
      %v957 = vmul.f32 %v700, %v865
      %v958 = vmul.f32 %v759, %v869
      %v959 = vmul.f32 %v761, %v873
      %v960 = vmul.f32 %v582, %v845
      %v961 = vmul.f32 %v584, %v849
      %v962 = vmul.f32 %v643, %v853
      %v963 = vmul.f32 %v645, %v857
      %v964 = vmul.f32 %v704, %v861
      %v965 = vmul.f32 %v706, %v865
      %v966 = vmul.f32 %v765, %v869
      %v967 = vmul.f32 %v767, %v873
      %968 = vst [vmem:[%s369] sm:$0xff] %v944
      %969 = vst [vmem:[%s369 + $0x8] sm:$0xff] %v945
      %970 = vst [vmem:[%s369 + $0x10] sm:$0xff] %v946
      %971 = vst [vmem:[%s369 + $0x18] sm:$0xff] %v947
      %972 = vst [vmem:[%s369 + $0x20] sm:$0xff] %v948
      %973 = vst [vmem:[%s369 + $0x28] sm:$0xff] %v949
      %974 = vst [vmem:[%s369 + $0x30] sm:$0xff] %v950
      %975 = vst [vmem:[%s369 + $0x38] sm:$0xff] %v951
      %976 = vst [vmem:[%s369 + $0x40] sm:$0xff] %v952
      %977 = vst [vmem:[%s369 + $0x48] sm:$0xff] %v953
      %978 = vst [vmem:[%s369 + $0x50] sm:$0xff] %v954
      %979 = vst [vmem:[%s369 + $0x58] sm:$0xff] %v955
      %980 = vst [vmem:[%s369 + $0x60] sm:$0xff] %v956
      %981 = vst [vmem:[%s369 + $0x68] sm:$0xff] %v957
      %982 = vst [vmem:[%s369 + $0x70] sm:$0xff] %v958
      %983 = vst [vmem:[%s369 + $0x78] sm:$0xff] %v959
      %984 = vst [vmem:[%s369 + $0x80] sm:$0xf] %v960
      %985 = vst [vmem:[%s369 + $0x88] sm:$0xf] %v961
      %986 = vst [vmem:[%s369 + $0x90] sm:$0xf] %v962
      %987 = vst [vmem:[%s369 + $0x98] sm:$0xf] %v963
      %988 = vst [vmem:[%s369 + $0xa0] sm:$0xf] %v964
      %989 = vst [vmem:[%s369 + $0xa8] sm:$0xf] %v965
      %990 = vst [vmem:[%s369 + $0xb0] sm:$0xf] %v966
      %991 = vst [vmem:[%s369 + $0xb8] sm:$0xf] %v967
      %s992 = smul.u32 8, %s23
      %p993 = scmp.lt.s32.totalorder %s22, 1
      %s994 = scalar_select %p993, %s22, 1
      %p995 = scmp.lt.s32.totalorder %s992, 7
      %s996 = scalar_select %p995, %s992, 7
      %s997 = smul.addr %s994, 8
      %s998 = sadd.s32 %s996, %s997
      %s999 = smul.addr %s998, 2
      %s1000 = scalar_lea.vmem %s4, %s999
      %s1001 = smul.u32 8, %s23
      %p1002 = scmp.lt.s32.totalorder %s22, 1
      %s1003 = scalar_select %p1002, %s22, 1
      %p1004 = scmp.lt.s32.totalorder %s1001, 7
      %s1005 = scalar_select %p1004, %s1001, 7
      %s1006 = smul.addr %s1003, 8
      %s1007 = sadd.s32 %s1005, %s1006
      %s1008 = smul.addr %s1007, 2
      %s1009 = scalar_lea.vmem %s5, %s1008
      %s1010 = smul.u32 8, %s23
      %p1011 = scmp.lt.s32.totalorder %s22, 1
      %s1012 = scalar_select %p1011, %s22, 1
      %p1013 = scmp.lt.s32.totalorder %s1010, 7
      %s1014 = scalar_select %p1013, %s1010, 7
      %s1015 = smul.addr %s1012, 24
      %s1016 = sadd.s32 %s1014, %s1015
      %s1017 = smul.addr %s1016, 8
      %s1018 = scalar_lea.vmem %s6, %s1017
      // Predicated region
      $region37: #{ssn_wrapped_deep_supervision_forward.2} parent=35 // pred_check
        %p1019 = pneg %p148
      $region38: #{ssn_wrapped_deep_supervision_forward.2} parent=35 // pred_check_branch
        %1021 = sbr.rel (%p1019) target = $region40
      $region39: #{ssn_wrapped_deep_supervision_forward.2} parent=35 // pred_region
        %s1022 = smul.u32 8, %s23
      $region40: #{ssn_wrapped_deep_supervision_forward.2} parent=35 // pred_fallthru
        _
      // Predicated region
      $region41: #{ssn_wrapped_deep_supervision_forward.2} parent=35 // pred_check
        %p1023 = pneg %p176
      $region42: #{ssn_wrapped_deep_supervision_forward.2} parent=35 // pred_check_branch
        %1025 = sbr.rel (%p1023) target = $region44
      $region43: #{ssn_wrapped_deep_supervision_forward.2} parent=35 // pred_region
        %s1026 = smul.u32 8, %s23
      $region44: #{ssn_wrapped_deep_supervision_forward.2} parent=35 // pred_fallthru
        _
      // Predicated region
      $region45: #{ssn_wrapped_deep_supervision_forward.2} parent=35 // pred_check
        %p1027 = pneg %p204
      $region46: #{ssn_wrapped_deep_supervision_forward.2} parent=35 // pred_check_branch
        %1029 = sbr.rel (%p1027) target = $region48
      $region47: #{ssn_wrapped_deep_supervision_forward.2} parent=35 // pred_region
        %s1030 = smul.u32 8, %s23
      $region48: #{ssn_wrapped_deep_supervision_forward.2} parent=35 // pred_fallthru
        _
    $region36: #{ssn_wrapped_deep_supervision_forward.2} parent=5 // pred_fallthru
      _
    %p1031 = scmp.le.s32.totalorder 2, %s13
    // Predicated region
    $region49: #{ssn_wrapped_deep_supervision_forward.2} parent=5 // pred_check
      %p1032 = pneg %p1031
    $region50: #{ssn_wrapped_deep_supervision_forward.2} parent=5 // pred_check_branch
      %1034 = sbr.rel (%p1032) target = $region52
    $region51: #{ssn_wrapped_deep_supervision_forward.2} parent=5 // pred_region
      %s1035 = ssub.s32 %s13, 2
      // Predicated region
      $region53: #{ssn_wrapped_deep_supervision_forward.2} parent=51 // pred_check
        %p1036 = pneg %p154
      $region54: #{ssn_wrapped_deep_supervision_forward.2} parent=51 // pred_check_branch
        %1038 = sbr.rel (%p1036) target = $region56
      $region55: #{ssn_wrapped_deep_supervision_forward.2} parent=51 // pred_region
        %s1039 = smul.u32 8, %s25
        %p1040 = scmp.lt.s32.totalorder %s24, 1
        %s1041 = scalar_select %p1040, %s24, 1
        %p1042 = scmp.lt.s32.totalorder %s1039, 7
        %s1043 = scalar_select %p1042, %s1039, 7
        %s1044 = smul.addr %s1041, 8
        %s1045 = sadd.s32 %s1043, %s1044
        %s1046 = smul.addr %s1045, 2
        %s1047 = scalar_lea.vmem %s4, %s1046
      $region56: #{ssn_wrapped_deep_supervision_forward.2} parent=51 // pred_fallthru
        _
      // Predicated region
      $region57: #{ssn_wrapped_deep_supervision_forward.2} parent=51 // pred_check
        %p1048 = pneg %p182
      $region58: #{ssn_wrapped_deep_supervision_forward.2} parent=51 // pred_check_branch
        %1050 = sbr.rel (%p1048) target = $region60
      $region59: #{ssn_wrapped_deep_supervision_forward.2} parent=51 // pred_region
        %s1051 = smul.u32 8, %s25
        %p1052 = scmp.lt.s32.totalorder %s24, 1
        %s1053 = scalar_select %p1052, %s24, 1
        %p1054 = scmp.lt.s32.totalorder %s1051, 7
        %s1055 = scalar_select %p1054, %s1051, 7
        %s1056 = smul.addr %s1053, 8
        %s1057 = sadd.s32 %s1055, %s1056
        %s1058 = smul.addr %s1057, 2
        %s1059 = scalar_lea.vmem %s5, %s1058
      $region60: #{ssn_wrapped_deep_supervision_forward.2} parent=51 // pred_fallthru
        _
      // Predicated region
      $region61: #{ssn_wrapped_deep_supervision_forward.2} parent=51 // pred_check
        %p1060 = pneg %p210
      $region62: #{ssn_wrapped_deep_supervision_forward.2} parent=51 // pred_check_branch
        %1062 = sbr.rel (%p1060) target = $region64
      $region63: #{ssn_wrapped_deep_supervision_forward.2} parent=51 // pred_region
        %s1063 = smul.u32 8, %s25
        %p1064 = scmp.lt.s32.totalorder %s24, 1
        %s1065 = scalar_select %p1064, %s24, 1
        %p1066 = scmp.lt.s32.totalorder %s1063, 7
        %s1067 = scalar_select %p1066, %s1063, 7
        %s1068 = smul.addr %s1065, 24
        %s1069 = sadd.s32 %s1067, %s1068
        %s1070 = smul.addr %s1069, 8
        %s1071 = scalar_lea.vmem %s6, %s1070
      $region64: #{ssn_wrapped_deep_supervision_forward.2} parent=51 // pred_fallthru
        _
    $region52: #{ssn_wrapped_deep_supervision_forward.2} parent=5 // pred_fallthru
      _
  $region6: #{ssn_wrapped_deep_supervision_forward.2} parent=0 // loop_footer
    %s17 = sadd.s32 1, %s13
  $region7: #{ssn_wrapped_deep_supervision_forward.2} parent=0 // loop_footer_branch
    %12 = sbr.rel target = $region3
  $region8: #{ssn_wrapped_deep_supervision_forward.2} parent=0 // loop_exit
    _

// kernel: mul.17
$region0: #{mul.17}
  %s0 = inlined_call_operand.vmem [shape: f32[2,8,8], index: 0, kind: input, shape index: {}]
  %s1 = inlined_call_operand.vmem [shape: f32[2,64], index: 1, kind: output, shape index: {}]
  $region1: #{mul.17} parent=0
    #allocation0 [shape = 'u8[4096]{0}', space=vmem, size = 0x1000, scoped, tag = 'scoped mem for output reshape']
    %s2 = smov 3
    %v3 = vld [vmem:[%s0] ss:$8 sm:%s2]
    %vm4 = vcmask 64512
    %5 = vst.msk [vmem:[#allocation0] sm:$0x3] %vm4, %v3
    %s6 = scalar_lea.vmem %s0, 7
    %s7 = smov 3
    %v8 = vld [vmem:[%s6] ss:$8 sm:%s7]
    %9 = vrot.lane.b32.xlu0 %v8, 56
    %v10 = vpop.permute.xlu0 %9
    %vm11 = vcmask 523712
    %12 = vst.msk [vmem:[#allocation0] sm:$0x3] %vm11, %v10
    %s13 = scalar_lea.vmem %s0, 6
    %s14 = smov 3
    %v15 = vld [vmem:[%s13] ss:$8 sm:%s14]
    %16 = vrot.lane.b32.xlu0 %v15, 48
    %v17 = vpop.permute.xlu0 %16
    %vm18 = vcmask 458112
    %19 = vst.msk [vmem:[#allocation0] sm:$0x3] %vm18, %v17
    %s20 = scalar_lea.vmem %s0, 5
    %s21 = smov 3
    %v22 = vld [vmem:[%s20] ss:$8 sm:%s21]
    %23 = vrot.lane.b32.xlu0 %v22, 40
    %v24 = vpop.permute.xlu0 %23
    %vm25 = vcmask 392512
    %26 = vst.msk [vmem:[#allocation0] sm:$0x3] %vm25, %v24
    %s27 = scalar_lea.vmem %s0, 4
    %s28 = smov 3
    %v29 = vld [vmem:[%s27] ss:$8 sm:%s28]
    %30 = vrot.lane.b32.xlu0 %v29, 32
    %v31 = vpop.permute.xlu0 %30
    %vm32 = vcmask 326912
    %33 = vst.msk [vmem:[#allocation0] sm:$0x3] %vm32, %v31
    %s34 = scalar_lea.vmem %s0, 3
    %s35 = smov 3
    %v36 = vld [vmem:[%s34] ss:$8 sm:%s35]
    %37 = vrot.lane.b32.xlu0 %v36, 24
    %v38 = vpop.permute.xlu0 %37
    %vm39 = vcmask 261312
    %40 = vst.msk [vmem:[#allocation0] sm:$0x3] %vm39, %v38
    %s41 = scalar_lea.vmem %s0, 2
    %s42 = smov 3
    %v43 = vld [vmem:[%s41] ss:$8 sm:%s42]
    %44 = vrot.lane.b32.xlu0 %v43, 16
    %v45 = vpop.permute.xlu0 %44
    %vm46 = vcmask 195712
    %47 = vst.msk [vmem:[#allocation0] sm:$0x3] %vm46, %v45
    %s48 = scalar_lea.vmem %s0, 1
    %s49 = smov 3
    %v50 = vld [vmem:[%s48] ss:$8 sm:%s49]
    %51 = vrot.lane.b32.xlu0 %v50, 8
    %v52 = vpop.permute.xlu0 %51
    %vm53 = vcmask 130112
    %54 = vst.msk [vmem:[#allocation0] sm:$0x3] %vm53, %v52
    %s56 = sshll.u32 1, 2
    %s57 = ssub.s32 %s56, 1
    %v59 = vld [vmem:[#allocation0] sm:%s57]
    %s60 = sshll.u32 1, 2
    %s61 = ssub.s32 %s60, 1
    %62 = vst [vmem:[%s1] sm:%s61] %v59

// kernel: ssn_wrapped_deep_supervision_forward.3
$region0: #{ssn_wrapped_deep_supervision_forward.3}
  #allocation0 [shape = 'u32[]', space=smem, size = 0x4, offset = 0x4, fixed_abs, tag = 'smem constant byte address 0x4 - core index']
  #allocation1 [shape = 'u32[144,128]{1,0:T(1,128)}', space=vmem, size = 0x12000, scoped, tag = 'internal scratch']
  %s0 = inlined_call_operand.vmem [shape: bf16[2,32,256], index: 0, kind: input, shape index: {}]
  %s1 = inlined_call_operand.vmem [shape: f32[2,1,256], index: 1, kind: input, shape index: {}]
  %s2 = inlined_call_operand.vmem [shape: bf16[40,32], index: 2, kind: input, shape index: {}]
  %s3 = inlined_call_operand.vmem [shape: f32[40,1], index: 3, kind: input, shape index: {}]
  %s4 = inlined_call_operand.vmem [shape: f32[2,2,256], index: 4, kind: output, shape index: {0}]
  %s5 = inlined_call_operand.vmem [shape: f32[2,2,256], index: 5, kind: output, shape index: {1}]
  %s6 = inlined_call_operand.vmem [shape: f32[2,20,256], index: 6, kind: output, shape index: {2}]
  %7 = xla_tuple %s4, %s5, %s6
  %s8 = sld [smem:[#allocation0]]
  $region65: #{ssn_wrapped_deep_supervision_forward.3} parent=0
    _
  %s10 = ssub.s32 1, %s8
  %s11 = scalar_select 0, %s10, %s8
  loop: start=0, step=1, limit=4
  $region2: #{ssn_wrapped_deep_supervision_forward.3} parent=0 // loop_pre_header
    _
  $region3: #{ssn_wrapped_deep_supervision_forward.3} parent=0 // loop_header
    %s13 = sphi 0, %s17
    %p14 = scmp.ge.s32.totalorder %s13, 4
    %s20 = sphi 0, %s32
    %s21 = sphi 0, %s28
    %s22 = sphi 0, %s20
    %s23 = sphi 0, %s21
    %s24 = sphi 0, %s22
    %s25 = sphi 0, %s23
    %s37 = sphi 0, %s39
    %s40 = sphi 0, %s37
    %s41 = sphi 0, %s40
    %s57 = sphi 0, %s41
    %s65 = sphi 0, %s67
    %s68 = sphi 0, %s65
    %s69 = sphi 0, %s68
    %s85 = sphi 0, %s69
    %s89 = sphi 0, %s89
    %s91 = sphi 0, %s89
    %s92 = sphi 0, %s91
    %s106 = sphi 0, %s92
    %s110 = sphi 0, %s110
    %s112 = sphi 0, %s110
    %s113 = sphi 0, %s112
    %s127 = sphi 0, %s113
    %s135 = sphi 0, %s137
    %s138 = sphi 0, %s135
    %s139 = sphi 0, %s138
    %s155 = sphi 0, %s139
    %s163 = sphi 0, %s165
    %s166 = sphi 0, %s163
    %s167 = sphi 0, %s166
    %s183 = sphi 0, %s167
    %s191 = sphi 0, %s193
    %s194 = sphi 0, %s191
    %s195 = sphi 0, %s194
    %s211 = sphi 0, %s195
  $region4: #{ssn_wrapped_deep_supervision_forward.3} parent=0 // loop_header_branch
    %16 = sbr.rel (%p14) target = $region8
  $region5: #{ssn_wrapped_deep_supervision_forward.3} parent=0 // loop_body
    %s18 = ssub.s32 %s13, 1
    %s19 = ssub.s32 %s13, 2
    %s26 = sadd.s32 1, %s21
    %p27 = scmp.ge.s32.totalorder %s26, 1
    %s28 = scalar_select %p27, 0, %s26
    %s29 = sadd.s32 1, %s20
    %s30 = scalar_select %p27, %s29, %s20
    %p31 = scmp.ge.s32.totalorder %s30, 2
    %s32 = scalar_select %p31, 0, %s30
    %s33 = ssub.s32 %s20, %s32
    %s34 = ssub.s32 %s21, %s28
    %s35 = sor.u32 %s33, %s34
    %p36 = scmp.eq.s32.totalorder %s35, 0
    %s38 = sadd.s32 %s37, 1
    %s39 = scalar_select %p36, %s37, %s38
    %p42 = pneg %p36
    %p43 = scmp.eq.s32.totalorder %s13, 1
    %p44 = por %p42, %p43
    %p45 = scmp.ne.s32.totalorder %s37, %s40
    %p46 = scmp.eq.s32.totalorder %s13, 0
    %p47 = por %p45, %p46
    %p48 = scmp.ne.s32.totalorder %s37, %s40
    %p49 = scmp.eq.s32.totalorder %s18, 1
    %p50 = por %p48, %p49
    %p51 = scmp.ne.s32.totalorder %s40, %s41
    %p52 = scmp.eq.s32.totalorder %s18, 0
    %p53 = por %p51, %p52
    %p54 = scmp.ne.s32.totalorder %s40, %s41
    %p55 = scmp.eq.s32.totalorder %s19, 1
    %p56 = por %p54, %p55
    %p58 = scmp.ne.s32.totalorder %s41, %s57
    %p59 = scmp.eq.s32.totalorder %s19, 0
    %p60 = por %p58, %p59
    %s61 = ssub.s32 %s20, %s32
    %s62 = ssub.s32 %s21, %s28
    %s63 = sor.u32 %s61, %s62
    %p64 = scmp.eq.s32.totalorder %s63, 0
    %s66 = sadd.s32 %s65, 1
    %s67 = scalar_select %p64, %s65, %s66
    %p70 = pneg %p64
    %p71 = scmp.eq.s32.totalorder %s13, 1
    %p72 = por %p70, %p71
    %p73 = scmp.ne.s32.totalorder %s65, %s68
    %p74 = scmp.eq.s32.totalorder %s13, 0
    %p75 = por %p73, %p74
    %p76 = scmp.ne.s32.totalorder %s65, %s68
    %p77 = scmp.eq.s32.totalorder %s18, 1
    %p78 = por %p76, %p77
    %p79 = scmp.ne.s32.totalorder %s68, %s69
    %p80 = scmp.eq.s32.totalorder %s18, 0
    %p81 = por %p79, %p80
    %p82 = scmp.ne.s32.totalorder %s68, %s69
    %p83 = scmp.eq.s32.totalorder %s19, 1
    %p84 = por %p82, %p83
    %p86 = scmp.ne.s32.totalorder %s69, %s85
    %p87 = scmp.eq.s32.totalorder %s19, 0
    %p88 = por %p86, %p87
    %s90 = sadd.s32 %s89, 1
    %p93 = scmp.eq.s32.totalorder %s13, 1
    %p94 = scmp.ne.s32.totalorder %s89, %s91
    %p95 = scmp.eq.s32.totalorder %s13, 0
    %p96 = por %p94, %p95
    %p97 = scmp.ne.s32.totalorder %s89, %s91
    %p98 = scmp.eq.s32.totalorder %s18, 1
    %p99 = por %p97, %p98
    %p100 = scmp.ne.s32.totalorder %s91, %s92
    %p101 = scmp.eq.s32.totalorder %s18, 0
    %p102 = por %p100, %p101
    %p103 = scmp.ne.s32.totalorder %s91, %s92
    %p104 = scmp.eq.s32.totalorder %s19, 1
    %p105 = por %p103, %p104
    %p107 = scmp.ne.s32.totalorder %s92, %s106
    %p108 = scmp.eq.s32.totalorder %s19, 0
    %p109 = por %p107, %p108
    %s111 = sadd.s32 %s110, 1
    %p114 = scmp.eq.s32.totalorder %s13, 1
    %p115 = scmp.ne.s32.totalorder %s110, %s112
    %p116 = scmp.eq.s32.totalorder %s13, 0
    %p117 = por %p115, %p116
    %p118 = scmp.ne.s32.totalorder %s110, %s112
    %p119 = scmp.eq.s32.totalorder %s18, 1
    %p120 = por %p118, %p119
    %p121 = scmp.ne.s32.totalorder %s112, %s113
    %p122 = scmp.eq.s32.totalorder %s18, 0
    %p123 = por %p121, %p122
    %p124 = scmp.ne.s32.totalorder %s112, %s113
    %p125 = scmp.eq.s32.totalorder %s19, 1
    %p126 = por %p124, %p125
    %p128 = scmp.ne.s32.totalorder %s113, %s127
    %p129 = scmp.eq.s32.totalorder %s19, 0
    %p130 = por %p128, %p129
    %s131 = ssub.s32 %s20, %s32
    %s132 = ssub.s32 %s21, %s28
    %s133 = sor.u32 %s131, %s132
    %p134 = scmp.eq.s32.totalorder %s133, 0
    %s136 = sadd.s32 %s135, 1
    %s137 = scalar_select %p134, %s135, %s136
    %p140 = pneg %p134
    %p141 = scmp.eq.s32.totalorder %s13, 1
    %p142 = por %p140, %p141
    %p143 = scmp.ne.s32.totalorder %s135, %s138
    %p144 = scmp.eq.s32.totalorder %s13, 0
    %p145 = por %p143, %p144
    %p146 = scmp.ne.s32.totalorder %s135, %s138
    %p147 = scmp.eq.s32.totalorder %s18, 1
    %p148 = por %p146, %p147
    %p149 = scmp.ne.s32.totalorder %s138, %s139
    %p150 = scmp.eq.s32.totalorder %s18, 0
    %p151 = por %p149, %p150
    %p152 = scmp.ne.s32.totalorder %s138, %s139
    %p153 = scmp.eq.s32.totalorder %s19, 1
    %p154 = por %p152, %p153
    %p156 = scmp.ne.s32.totalorder %s139, %s155
    %p157 = scmp.eq.s32.totalorder %s19, 0
    %p158 = por %p156, %p157
    %s159 = ssub.s32 %s20, %s32
    %s160 = ssub.s32 %s21, %s28
    %s161 = sor.u32 %s159, %s160
    %p162 = scmp.eq.s32.totalorder %s161, 0
    %s164 = sadd.s32 %s163, 1
    %s165 = scalar_select %p162, %s163, %s164
    %p168 = pneg %p162
    %p169 = scmp.eq.s32.totalorder %s13, 1
    %p170 = por %p168, %p169
    %p171 = scmp.ne.s32.totalorder %s163, %s166
    %p172 = scmp.eq.s32.totalorder %s13, 0
    %p173 = por %p171, %p172
    %p174 = scmp.ne.s32.totalorder %s163, %s166
    %p175 = scmp.eq.s32.totalorder %s18, 1
    %p176 = por %p174, %p175
    %p177 = scmp.ne.s32.totalorder %s166, %s167
    %p178 = scmp.eq.s32.totalorder %s18, 0
    %p179 = por %p177, %p178
    %p180 = scmp.ne.s32.totalorder %s166, %s167
    %p181 = scmp.eq.s32.totalorder %s19, 1
    %p182 = por %p180, %p181
    %p184 = scmp.ne.s32.totalorder %s167, %s183
    %p185 = scmp.eq.s32.totalorder %s19, 0
    %p186 = por %p184, %p185
    %s187 = ssub.s32 %s20, %s32
    %s188 = ssub.s32 %s21, %s28
    %s189 = sor.u32 %s187, %s188
    %p190 = scmp.eq.s32.totalorder %s189, 0
    %s192 = sadd.s32 %s191, 1
    %s193 = scalar_select %p190, %s191, %s192
    %p196 = pneg %p190
    %p197 = scmp.eq.s32.totalorder %s13, 1
    %p198 = por %p196, %p197
    %p199 = scmp.ne.s32.totalorder %s191, %s194
    %p200 = scmp.eq.s32.totalorder %s13, 0
    %p201 = por %p199, %p200
    %p202 = scmp.ne.s32.totalorder %s191, %s194
    %p203 = scmp.eq.s32.totalorder %s18, 1
    %p204 = por %p202, %p203
    %p205 = scmp.ne.s32.totalorder %s194, %s195
    %p206 = scmp.eq.s32.totalorder %s18, 0
    %p207 = por %p205, %p206
    %p208 = scmp.ne.s32.totalorder %s194, %s195
    %p209 = scmp.eq.s32.totalorder %s19, 1
    %p210 = por %p208, %p209
    %p212 = scmp.ne.s32.totalorder %s195, %s211
    %p213 = scmp.eq.s32.totalorder %s19, 0
    %p214 = por %p212, %p213
    %p215 = scmp.le.s32.totalorder 1, %s13
    %p216 = scmp.lt.s32.totalorder %s13, 3
    %p217 = pnand %p215, %p216
    %p218 = pneg %p217
    // Predicated region
    $region9: #{ssn_wrapped_deep_supervision_forward.3} parent=5 // pred_check
      _
    $region10: #{ssn_wrapped_deep_supervision_forward.3} parent=5 // pred_check_branch
      %220 = sbr.rel (%p217) target = $region12
    $region11: #{ssn_wrapped_deep_supervision_forward.3} parent=5 // pred_region
      %s221 = ssub.s32 %s13, 1
      // Predicated region
      $region13: #{ssn_wrapped_deep_supervision_forward.3} parent=11 // pred_check
        %p222 = pneg %p102
      $region14: #{ssn_wrapped_deep_supervision_forward.3} parent=11 // pred_check_branch
        %224 = sbr.rel (%p222) target = $region16
      $region15: #{ssn_wrapped_deep_supervision_forward.3} parent=11 // pred_region
        _
      $region16: #{ssn_wrapped_deep_supervision_forward.3} parent=11 // pred_fallthru
        _
      // Predicated region
      $region17: #{ssn_wrapped_deep_supervision_forward.3} parent=11 // pred_check
        %p225 = pneg %p123
      $region18: #{ssn_wrapped_deep_supervision_forward.3} parent=11 // pred_check_branch
        %227 = sbr.rel (%p225) target = $region20
      $region19: #{ssn_wrapped_deep_supervision_forward.3} parent=11 // pred_region
        _
      $region20: #{ssn_wrapped_deep_supervision_forward.3} parent=11 // pred_fallthru
        _
    $region12: #{ssn_wrapped_deep_supervision_forward.3} parent=5 // pred_fallthru
      _
    %p228 = scmp.lt.s32.totalorder %s13, 2
    // Predicated region
    $region21: #{ssn_wrapped_deep_supervision_forward.3} parent=5 // pred_check
      %p229 = pneg %p228
    $region22: #{ssn_wrapped_deep_supervision_forward.3} parent=5 // pred_check_branch
      %231 = sbr.rel (%p229) target = $region24
    $region23: #{ssn_wrapped_deep_supervision_forward.3} parent=5 // pred_region
      // Predicated region
      $region25: #{ssn_wrapped_deep_supervision_forward.3} parent=23 // pred_check
        %p232 = pneg %p47
      $region26: #{ssn_wrapped_deep_supervision_forward.3} parent=23 // pred_check_branch
        %234 = sbr.rel (%p232) target = $region28
      $region27: #{ssn_wrapped_deep_supervision_forward.3} parent=23 // pred_region
        %s235 = smul.u32 2, %s21
        %p236 = scmp.lt.s32.totalorder %s20, 1
        %s237 = scalar_select %p236, %s20, 1
        %p238 = scmp.lt.s32.totalorder %s235, 1
        %s239 = scalar_select %p238, %s235, 1
        %s240 = smul.addr %s237, 8
        %s241 = sadd.s32 %s239, %s240
        %s242 = smul.addr %s241, 4
        %s243 = scalar_lea.vmem %s0, %s242
        %s244 = smul.u32 2, %s21
      $region28: #{ssn_wrapped_deep_supervision_forward.3} parent=23 // pred_fallthru
        _
      // Predicated region
      $region29: #{ssn_wrapped_deep_supervision_forward.3} parent=23 // pred_check
        %p245 = pneg %p75
      $region30: #{ssn_wrapped_deep_supervision_forward.3} parent=23 // pred_check_branch
        %247 = sbr.rel (%p245) target = $region32
      $region31: #{ssn_wrapped_deep_supervision_forward.3} parent=23 // pred_region
        %s248 = smul.u32 2, %s21
        %p249 = scmp.lt.s32.totalorder %s20, 1
        %s250 = scalar_select %p249, %s20, 1
        %p251 = scmp.lt.s32.totalorder %s248, 1
        %s252 = scalar_select %p251, %s248, 1
        %s253 = smul.addr %s250, 2
        %s254 = sadd.s32 %s252, %s253
        %s255 = scalar_lea.vmem %s1, %s254
        %s256 = smul.u32 2, %s21
      $region32: #{ssn_wrapped_deep_supervision_forward.3} parent=23 // pred_fallthru
        _
    $region24: #{ssn_wrapped_deep_supervision_forward.3} parent=5 // pred_fallthru
      _
    %p257 = scmp.le.s32.totalorder 1, %s13
    %p258 = scmp.lt.s32.totalorder %s13, 3
    %p259 = pnand %p257, %p258
    %p260 = pneg %p259
    // Predicated region
    $region33: #{ssn_wrapped_deep_supervision_forward.3} parent=5 // pred_check
      _
    $region34: #{ssn_wrapped_deep_supervision_forward.3} parent=5 // pred_check_branch
      %262 = sbr.rel (%p259) target = $region36
    $region35: #{ssn_wrapped_deep_supervision_forward.3} parent=5 // pred_region
      %s263 = ssub.s32 %s13, 1
      %s264 = smul.u32 2, %s23
      %p265 = scmp.lt.s32.totalorder %s22, 1
      %s266 = scalar_select %p265, %s22, 1
      %p267 = scmp.lt.s32.totalorder %s264, 1
      %s268 = scalar_select %p267, %s264, 1
      %s269 = smul.addr %s266, 8
      %s270 = sadd.s32 %s268, %s269
      %s271 = smul.addr %s270, 4
      %s272 = scalar_lea.vmem %s0, %s271
      %p273 = pneg %p53
      %p274 = pneg %p50
      %s275 = smul.u32 2, %s23
      %p276 = scmp.lt.s32.totalorder %s22, 1
      %s277 = scalar_select %p276, %s22, 1
      %p278 = scmp.lt.s32.totalorder %s275, 1
      %s279 = scalar_select %p278, %s275, 1
      %s280 = smul.addr %s277, 2
      %s281 = sadd.s32 %s279, %s280
      %s282 = scalar_lea.vmem %s1, %s281
      %p283 = pneg %p81
      %p284 = pneg %p78
      %p285 = pneg %p102
      %p286 = pneg %p99
      %p287 = pneg %p123
      %p288 = pneg %p120
      %p289 = pneg %p151
      %p290 = pneg %p148
      %s291 = smul.u32 2, %s23
      %p292 = scmp.lt.s32.totalorder %s22, 1
      %s293 = scalar_select %p292, %s22, 1
      %p294 = scmp.lt.s32.totalorder %s291, 1
      %s295 = scalar_select %p294, %s291, 1
      %s296 = smul.addr %s293, 2
      %s297 = sadd.s32 %s295, %s296
      %s298 = smul.addr %s297, 2
      %s299 = scalar_lea.vmem %s4, %s298
      %p300 = pneg %p179
      %p301 = pneg %p176
      %s302 = smul.u32 2, %s23
      %p303 = scmp.lt.s32.totalorder %s22, 1
      %s304 = scalar_select %p303, %s22, 1
      %p305 = scmp.lt.s32.totalorder %s302, 1
      %s306 = scalar_select %p305, %s302, 1
      %s307 = smul.addr %s304, 2
      %s308 = sadd.s32 %s306, %s307
      %s309 = smul.addr %s308, 2
      %s310 = scalar_lea.vmem %s5, %s309
      %p311 = pneg %p207
      %p312 = pneg %p204
      %s313 = smul.u32 2, %s23
      %p314 = scmp.lt.s32.totalorder %s22, 1
      %s315 = scalar_select %p314, %s22, 1
      %p316 = scmp.lt.s32.totalorder %s313, 1
      %s317 = scalar_select %p316, %s313, 1
      %s318 = smul.addr %s315, 6
      %s319 = sadd.s32 %s317, %s318
      %s320 = smul.addr %s319, 8
      %s321 = scalar_lea.vmem %s6, %s320
      %s322 = smul.u32 2, %s23
      %p323 = scmp.lt.s32.totalorder %s22, 1
      %s324 = scalar_select %p323, %s22, 1
      %p325 = scmp.lt.s32.totalorder %s322, 1
      %s326 = scalar_select %p325, %s322, 1
      %s327 = smul.addr %s324, 8
      %s328 = sadd.s32 %s326, %s327
      %s329 = smul.addr %s328, 4
      %s330 = scalar_lea.vmem %s0, %s329
      %s331 = smul.u32 2, %s23
      %s332 = smul.u32 2, %s23
      %p333 = scmp.lt.s32.totalorder %s22, 1
      %s334 = scalar_select %p333, %s22, 1
      %p335 = scmp.lt.s32.totalorder %s332, 1
      %s336 = scalar_select %p335, %s332, 1
      %s337 = smul.addr %s334, 2
      %s338 = sadd.s32 %s336, %s337
      %s339 = scalar_lea.vmem %s1, %s338
      %s340 = smul.u32 2, %s23
      %s341 = smul.u32 2, %s23
      %p342 = scmp.lt.s32.totalorder %s22, 1
      %s343 = scalar_select %p342, %s22, 1
      %p344 = scmp.lt.s32.totalorder %s341, 1
      %s345 = scalar_select %p344, %s341, 1
      %s346 = smul.addr %s343, 2
      %s347 = sadd.s32 %s345, %s346
      %s348 = smul.addr %s347, 2
      %s349 = scalar_lea.vmem %s4, %s348
      %s350 = smul.u32 2, %s23
      %s351 = smul.u32 2, %s23
      %p352 = scmp.lt.s32.totalorder %s22, 1
      %s353 = scalar_select %p352, %s22, 1
      %p354 = scmp.lt.s32.totalorder %s351, 1
      %s355 = scalar_select %p354, %s351, 1
      %s356 = smul.addr %s353, 2
      %s357 = sadd.s32 %s355, %s356
      %s358 = smul.addr %s357, 2
      %s359 = scalar_lea.vmem %s5, %s358
      %s360 = smul.u32 2, %s23
      %s361 = smul.u32 2, %s23
      %p362 = scmp.lt.s32.totalorder %s22, 1
      %s363 = scalar_select %p362, %s22, 1
      %p364 = scmp.lt.s32.totalorder %s361, 1
      %s365 = scalar_select %p364, %s361, 1
      %s366 = smul.addr %s363, 6
      %s367 = sadd.s32 %s365, %s366
      %s368 = smul.addr %s367, 8
      %s369 = scalar_lea.vmem %s6, %s368
      %s370 = smul.u32 2, %s23
      %v372 = vld [vmem:[%s330] sm:$0xff]
      %v373 = vld [vmem:[%s330 + $0x8] sm:$0xff]
      %v374 = vld [vmem:[%s330 + $0x10] sm:$0xff]
      %v375 = vld [vmem:[%s330 + $0x18] sm:$0xff]
      %v376 = vld [vmem:[%s339] sm:$0x3]
      %v377 = vld [vmem:[%s2] sm:$0xf]
      %v378 = vld [vmem:[%s2 + $0x4] sm:$0xf]
      %v379 = vld [vmem:[%s2 + $0x8] sm:$0xf]
      %v380 = vld [vmem:[%s2 + $0xc] sm:$0xf]
      %v381 = vld [vmem:[%s2 + $0x10] sm:$0xf]
      %v382 = vld [vmem:[%s3] sm:$0xff]
      %v383 = vld [vmem:[%s3 + $0x8] sm:$0xff]
      %v384 = vld [vmem:[%s3 + $0x10] sm:$0xff]
      %v385 = vld [vmem:[%s3 + $0x18] sm:$0xff]
      %v386 = vld [vmem:[%s3 + $0x20] sm:$0xff]
      %388 = vset.pattern.permute.xlu0 0
      %389 = vperm.xlu0 %388, %v382
      %v390 = vpop.permute.xlu0 %389
      %393 = vset.pattern.permute.xlu0 0
      %394 = vperm.xlu0 %393, %v383
      %v395 = vpop.permute.xlu0 %394
      %398 = vset.pattern.permute.xlu0 0
      %399 = vperm.xlu0 %398, %v384
      %v400 = vpop.permute.xlu0 %399
      %403 = vset.pattern.permute.xlu0 0
      %404 = vperm.xlu0 %403, %v385
      %v405 = vpop.permute.xlu0 %404
      %408 = vset.pattern.permute.xlu0 0
      %409 = vperm.xlu0 %408, %v386
      %v410 = vpop.permute.xlu0 %409
      %v417 = vunpack.c.l.b16 %v377
      %v418 = vunpack.c.l.b16 %v378
      %v419 = vunpack.c.l.b16 %v379
      %v420 = vunpack.c.l.b16 %v380
      %v421 = vunpack.c.l.b16 %v381
      %v422 = vpack.c.b16 %v418, %v417
      %v423 = vpack.c.b16 %v420, %v419
      %v424 = vpack.c.b16 %v421, %v421
      %v429 = vunpack.c.l.b16 %v372
      %v430 = vunpack.c.h.b16 %v372
      %v431 = vunpack.c.l.b16 %v373
      %v432 = vunpack.c.h.b16 %v373
      %v433 = vunpack.c.l.b16 %v374
      %v434 = vunpack.c.h.b16 %v374
      %v435 = vunpack.c.l.b16 %v375
      %v436 = vunpack.c.h.b16 %v375
      %v437 = vpack.c.b16 %v431, %v429
      %v438 = vpack.c.b16 %v432, %v430
      %v439 = vpack.c.b16 %v435, %v433
      %v440 = vpack.c.b16 %v436, %v434
      %vm445 = vcmask 261120
      %v447 = vsel %vm445, %v422, 0
      %v450 = vsel %vm445, %v423, 0
      %v453 = vsel %vm445, %v424, 0
      %455 = vmatprep.subr.bf16.mxu0 0
      %456 = vmatpush1.bf16.msra.mxu0 0
      %457 = vmatprep.subr.bf16.mxu0 0
      %458 = vmatpush1.bf16.msra.mxu0 0
      %459 = vmatprep.subr.bf16.mxu0 0
      %460 = vmatpush1.bf16.msra.mxu0 0
      %461 = vmatprep.subr.bf16.mxu0 0
      %462 = vmatpush1.bf16.msra.mxu0 0
      %463 = vmatprep.subr.bf16.mxu0 0
      %464 = vmatpush1.bf16.msra.mxu0 0
      %465 = vmatprep.subr.bf16.mxu0 0
      %466 = vmatpush1.bf16.msra.mxu0 0
      %467 = vmatprep.subr.bf16.mxu0 %v440
      %468 = vmatpush1.bf16.msra.mxu0 %v439
      %469 = vmatprep.subr.bf16.mxu0 %v438
      %470 = vmatpush1.bf16.msra.mxu0 %v437
      %471 = vmatprep.subr.bf16.mxu0 0
      %472 = vmatpush2.bf16.msra.mxu0 0
      %473 = vmatprep.subr.bf16.mxu0 0
      %474 = vmatpush2.bf16.msra.mxu0 0
      %475 = vmatprep.subr.bf16.mxu0 0
      %476 = vmatpush2.bf16.msra.mxu0 0
      %477 = vmatprep.subr.bf16.mxu0 0
      %478 = vmatpush2.bf16.msra.mxu0 0
      %479 = vmatprep.subr.bf16.mxu0 0
      %480 = vmatpush2.bf16.msra.mxu0 0
      %481 = vmatprep.subr.bf16.mxu0 0
      %482 = vmatpush2.bf16.msra.mxu0 0
      %483 = vmatprep.subr.bf16.mxu0 0
      %484 = vmatpush2.bf16.msra.mxu0 0
      %485 = vmatprep.subr.bf16.mxu0 0
      %486 = vmatpush2.bf16.msra.mxu0 0
      %487 = vmatprep.mubr.bf16.mxu0 0
      %488 = vmatmul.mubr.bf16.gmra.mxu0 %v447
      %v489 = vpop.f32.mrf.mxu0
      %v490 = vadd.f32 %v390, %v489
      %v491 = vpop.f32.mrf.mxu0
      %v492 = vadd.f32 %v390, %v491
      %v493 = vpop.f32.mrf.mxu0
      %v494 = vadd.f32 %v395, %v493
      %v495 = vpop.f32.mrf.mxu0
      %v496 = vadd.f32 %v395, %v495
      %497 = vmatprep.mubr.bf16.mxu0 0
      %498 = vmatmul.mubr.bf16.gmra.mxu0 %v450
      %v499 = vpop.f32.mrf.mxu0
      %v500 = vadd.f32 %v400, %v499
      %v501 = vpop.f32.mrf.mxu0
      %v502 = vadd.f32 %v400, %v501
      %v503 = vpop.f32.mrf.mxu0
      %v504 = vadd.f32 %v405, %v503
      %v505 = vpop.f32.mrf.mxu0
      %v506 = vadd.f32 %v405, %v505
      %507 = vmatprep.mubr.bf16.mxu0 0
      %508 = vmatmul.mubr.bf16.gmra.mxu0 %v453
      %v509 = vpop.f32.mrf.mxu0
      %v510 = vadd.f32 %v410, %v509
      %v511 = vpop.f32.mrf.mxu0
      %v512 = vadd.f32 %v410, %v511
      %v513 = vpop.f32.mrf.mxu0
      %v514 = vpop.f32.mrf.mxu0
      %515 = vdwg.mxu0
      %v518 = vcombine.low %v490, %v492
      %v520 = vunpack.c.l.s4 1983009808
      %v521 = vunpack.c.0.s8 %v520
      %v522 = vlaneseq
      %v523 = vshrl.u32 %v522, 7
      %v524 = vsub.s32 %v521, %v523
      %v525 = vrot.slane %v518, %v524
      %527 = vst [vmem:[%s349] sm:$0xf] %v525
      %v528 = vmul.f32 %v494, 1.442695
      %v529 = vpow.pop %v528
      %v530 = vmul.f32 %v496, 1.442695
      %v531 = vpow.pop %v530
      %v532 = vadd.f32 %v529, 1e-05
      %v533 = vadd.f32 %v531, 1e-05
      %v535 = vlaneseq
      %v536 = vshrl.u32 %v535, 7
      %v537 = vsub.s32 0, %v536
      %v538 = vrot.slane %v376, %v537
      %v539 = vlaneseq
      %v540 = vshrl.u32 %v539, 7
      %v541 = vsub.s32 1, %v540
      %v542 = vrot.slane %v376, %v541
      %v545 = vmul.f32 %v532, %v538
      %v546 = vmul.f32 %v533, %v542
      %v547 = vadd.f32 %v545, 1e-05
      %v548 = vadd.f32 %v546, 1e-05
      %v551 = vcombine.low %v547, %v548
      %v553 = vunpack.c.l.s4 1983009808
      %v554 = vunpack.c.0.s8 %v553
      %v555 = vlaneseq
      %v556 = vshrl.u32 %v555, 7
      %v557 = vsub.s32 %v554, %v556
      %v558 = vrot.slane %v551, %v557
      %560 = vst [vmem:[%s359] sm:$0xf] %v558
      %v561 = vmul.f32 %v500, %v538
      %v562 = vmul.f32 %v502, %v542
      %v563 = vmul.f32 %v504, %v538
      %v564 = vmul.f32 %v506, %v542
      %v565 = vmul.f32 %v510, %v538
      %v566 = vmul.f32 %v512, %v542
      %567 = vst [vmem:[%s369] sm:$0xff] %v561
      %568 = vst [vmem:[%s369 + $0x8] sm:$0xff] %v562
      %569 = vst [vmem:[%s369 + $0x10] sm:$0xff] %v563
      %570 = vst [vmem:[%s369 + $0x18] sm:$0xff] %v564
      %571 = vst [vmem:[%s369 + $0x20] sm:$0xf] %v565
      %572 = vst [vmem:[%s369 + $0x28] sm:$0xf] %v566
      %s573 = smul.u32 2, %s23
      %p574 = scmp.lt.s32.totalorder %s22, 1
      %s575 = scalar_select %p574, %s22, 1
      %p576 = scmp.lt.s32.totalorder %s573, 1
      %s577 = scalar_select %p576, %s573, 1
      %s578 = smul.addr %s575, 2
      %s579 = sadd.s32 %s577, %s578
      %s580 = smul.addr %s579, 2
      %s581 = scalar_lea.vmem %s4, %s580
      %s582 = smul.u32 2, %s23
      %p583 = scmp.lt.s32.totalorder %s22, 1
      %s584 = scalar_select %p583, %s22, 1
      %p585 = scmp.lt.s32.totalorder %s582, 1
      %s586 = scalar_select %p585, %s582, 1
      %s587 = smul.addr %s584, 2
      %s588 = sadd.s32 %s586, %s587
      %s589 = smul.addr %s588, 2
      %s590 = scalar_lea.vmem %s5, %s589
      %s591 = smul.u32 2, %s23
      %p592 = scmp.lt.s32.totalorder %s22, 1
      %s593 = scalar_select %p592, %s22, 1
      %p594 = scmp.lt.s32.totalorder %s591, 1
      %s595 = scalar_select %p594, %s591, 1
      %s596 = smul.addr %s593, 6
      %s597 = sadd.s32 %s595, %s596
      %s598 = smul.addr %s597, 8
      %s599 = scalar_lea.vmem %s6, %s598
      // Predicated region
      $region37: #{ssn_wrapped_deep_supervision_forward.3} parent=35 // pred_check
        %p600 = pneg %p148
      $region38: #{ssn_wrapped_deep_supervision_forward.3} parent=35 // pred_check_branch
        %602 = sbr.rel (%p600) target = $region40
      $region39: #{ssn_wrapped_deep_supervision_forward.3} parent=35 // pred_region
        %s603 = smul.u32 2, %s23
      $region40: #{ssn_wrapped_deep_supervision_forward.3} parent=35 // pred_fallthru
        _
      // Predicated region
      $region41: #{ssn_wrapped_deep_supervision_forward.3} parent=35 // pred_check
        %p604 = pneg %p176
      $region42: #{ssn_wrapped_deep_supervision_forward.3} parent=35 // pred_check_branch
        %606 = sbr.rel (%p604) target = $region44
      $region43: #{ssn_wrapped_deep_supervision_forward.3} parent=35 // pred_region
        %s607 = smul.u32 2, %s23
      $region44: #{ssn_wrapped_deep_supervision_forward.3} parent=35 // pred_fallthru
        _
      // Predicated region
      $region45: #{ssn_wrapped_deep_supervision_forward.3} parent=35 // pred_check
        %p608 = pneg %p204
      $region46: #{ssn_wrapped_deep_supervision_forward.3} parent=35 // pred_check_branch
        %610 = sbr.rel (%p608) target = $region48
      $region47: #{ssn_wrapped_deep_supervision_forward.3} parent=35 // pred_region
        %s611 = smul.u32 2, %s23
      $region48: #{ssn_wrapped_deep_supervision_forward.3} parent=35 // pred_fallthru
        _
    $region36: #{ssn_wrapped_deep_supervision_forward.3} parent=5 // pred_fallthru
      _
    %p612 = scmp.le.s32.totalorder 2, %s13
    // Predicated region
    $region49: #{ssn_wrapped_deep_supervision_forward.3} parent=5 // pred_check
      %p613 = pneg %p612
    $region50: #{ssn_wrapped_deep_supervision_forward.3} parent=5 // pred_check_branch
      %615 = sbr.rel (%p613) target = $region52
    $region51: #{ssn_wrapped_deep_supervision_forward.3} parent=5 // pred_region
      %s616 = ssub.s32 %s13, 2
      // Predicated region
      $region53: #{ssn_wrapped_deep_supervision_forward.3} parent=51 // pred_check
        %p617 = pneg %p154
      $region54: #{ssn_wrapped_deep_supervision_forward.3} parent=51 // pred_check_branch
        %619 = sbr.rel (%p617) target = $region56
      $region55: #{ssn_wrapped_deep_supervision_forward.3} parent=51 // pred_region
        %s620 = smul.u32 2, %s25
        %p621 = scmp.lt.s32.totalorder %s24, 1
        %s622 = scalar_select %p621, %s24, 1
        %p623 = scmp.lt.s32.totalorder %s620, 1
        %s624 = scalar_select %p623, %s620, 1
        %s625 = smul.addr %s622, 2
        %s626 = sadd.s32 %s624, %s625
        %s627 = smul.addr %s626, 2
        %s628 = scalar_lea.vmem %s4, %s627
      $region56: #{ssn_wrapped_deep_supervision_forward.3} parent=51 // pred_fallthru
        _
      // Predicated region
      $region57: #{ssn_wrapped_deep_supervision_forward.3} parent=51 // pred_check
        %p629 = pneg %p182
      $region58: #{ssn_wrapped_deep_supervision_forward.3} parent=51 // pred_check_branch
        %631 = sbr.rel (%p629) target = $region60
      $region59: #{ssn_wrapped_deep_supervision_forward.3} parent=51 // pred_region
        %s632 = smul.u32 2, %s25
        %p633 = scmp.lt.s32.totalorder %s24, 1
        %s634 = scalar_select %p633, %s24, 1
        %p635 = scmp.lt.s32.totalorder %s632, 1
        %s636 = scalar_select %p635, %s632, 1
        %s637 = smul.addr %s634, 2
        %s638 = sadd.s32 %s636, %s637
        %s639 = smul.addr %s638, 2
        %s640 = scalar_lea.vmem %s5, %s639
      $region60: #{ssn_wrapped_deep_supervision_forward.3} parent=51 // pred_fallthru
        _
      // Predicated region
      $region61: #{ssn_wrapped_deep_supervision_forward.3} parent=51 // pred_check
        %p641 = pneg %p210
      $region62: #{ssn_wrapped_deep_supervision_forward.3} parent=51 // pred_check_branch
        %643 = sbr.rel (%p641) target = $region64
      $region63: #{ssn_wrapped_deep_supervision_forward.3} parent=51 // pred_region
        %s644 = smul.u32 2, %s25
        %p645 = scmp.lt.s32.totalorder %s24, 1
        %s646 = scalar_select %p645, %s24, 1
        %p647 = scmp.lt.s32.totalorder %s644, 1
        %s648 = scalar_select %p647, %s644, 1
        %s649 = smul.addr %s646, 6
        %s650 = sadd.s32 %s648, %s649
        %s651 = smul.addr %s650, 8
        %s652 = scalar_lea.vmem %s6, %s651
      $region64: #{ssn_wrapped_deep_supervision_forward.3} parent=51 // pred_fallthru
        _
    $region52: #{ssn_wrapped_deep_supervision_forward.3} parent=5 // pred_fallthru
      _
  $region6: #{ssn_wrapped_deep_supervision_forward.3} parent=0 // loop_footer
    %s17 = sadd.s32 1, %s13
  $region7: #{ssn_wrapped_deep_supervision_forward.3} parent=0 // loop_footer_branch
    %12 = sbr.rel target = $region3
  $region8: #{ssn_wrapped_deep_supervision_forward.3} parent=0 // loop_exit
    _

</llo_original>
